<compile_context>
chip_gen: v7x
topology: tpu7x:2x2x1
jax: 0.10.0
libtpu: 0.0.40
codegen_flags: <defaults>
</compile_context>

<pallas_src>
import functools

import jax
import jax.numpy as jnp
import numpy as np
from jax.experimental import pallas as pl
from jax.experimental.pallas import tpu as pltpu

# ----------------------------- config -----------------------------------
N_HEAD = 4
N_EMBD = 32
ROPE_BASE = 10000.0
MASK_VALUE = -1e30       # finite "minus infinity" (diagonal is always unmasked)


# ----------------------------- kernel -----------------------------------
def _attn_kernel(x_ref, w5_ref, wp_ref, cs_ref, o_ref, *, n_head: int, head_dim: int):
    # x_ref:  (T, C)        one batch element (grid axis = batch, squeezed)
    # w5_ref: (5, C, H*Dh)  [wq*scale, (wq@P)*scale, wk, wk@P, wv], heads fused on lanes
    # wp_ref: (H, Dh, C)    output projection split into per-head row blocks
    # cs_ref: (2, T, H*Dh)  RoPE cos / sin (interleaved-pair layout, tiled over heads)
    # o_ref:  (T, C)
    x = x_ref[...]
    cos = cs_ref[0]
    sin = cs_ref[1]

    # Fused, lane-dense QKV(+rotated) projections: 5 wide matmuls instead of 5*H tiny ones.
    q_all = jnp.dot(x, w5_ref[0], preferred_element_type=jnp.float32)   # (T, H*Dh)
    qr_all = jnp.dot(x, w5_ref[1], preferred_element_type=jnp.float32)
    k_all = jnp.dot(x, w5_ref[2], preferred_element_type=jnp.float32)
    kr_all = jnp.dot(x, w5_ref[3], preferred_element_type=jnp.float32)
    v_all = jnp.dot(x, w5_ref[4], preferred_element_type=jnp.float32)

    # RoPE on the full-width slab (pair rotation already baked into qr/kr weights).
    q_all = q_all * cos + qr_all * sin
    k_all = k_all * cos + kr_all * sin

    # Causal mask generated in-kernel (no materialized mask buffer).
    t = x.shape[0]
    row = jax.lax.broadcasted_iota(jnp.int32, (t, t), 0)
    col = jax.lax.broadcasted_iota(jnp.int32, (t, t), 1)
    causal = col <= row

    contract_last = (((1,), (1,)), ((), ()))      # q @ k.T without materializing k.T
    y = jnp.zeros(o_ref.shape, jnp.float32)

    # n_head is small and static -> unrolled Python loop; per-head operands are
    # static lane slices of the fused slabs.
    for h in range(n_head):
        sl = slice(h * head_dim, (h + 1) * head_dim)
        q = q_all[:, sl]
        k = k_all[:, sl]
        v = v_all[:, sl]

        # Scores (1/sqrt(Dh) folded into wq) + causal mask.
        s = jax.lax.dot_general(q, k, contract_last,
                                preferred_element_type=jnp.float32)      # (T, T)
        s = jnp.where(causal, s, MASK_VALUE)

        m = jnp.max(s, axis=-1, keepdims=True)
        p = jnp.exp(s - m)
        denom = jnp.sum(p, axis=-1, keepdims=True)

        o_h = jnp.dot(p, v, preferred_element_type=jnp.float32)          # (T, Dh)

        # Deferred softmax normalization: EUP approx reciprocal + one Newton step.
        inv = pl.reciprocal(denom, approx=True)
        inv = inv * (2.0 - denom * inv)
        o_h = o_h * inv

        y = y + jnp.dot(o_h, wp_ref[h], preferred_element_type=jnp.float32)  # (T, C)

    o_ref[...] = y.astype(o_ref.dtype)


# ----------------------------- host-side prep -----------------------------
def _prep_params(w_attn, w_proj, n_head):
    """One-time parameter fold (traced once under jit)."""
    C = w_attn.shape[0]
    Dh = C // n_head
    scale = 1.0 / float(np.sqrt(Dh))

    # Interleaved-pair rotation matrix P: (z @ P)[2d] = -z[2d+1], (z @ P)[2d+1] = z[2d]
    P = np.zeros((Dh, Dh), np.float32)
    for d in range(Dh // 2):
        P[2 * d + 1, 2 * d] = -1.0
        P[2 * d, 2 * d + 1] = 1.0
    P = jnp.asarray(P)

    def fold_rot(w):                                # apply P per-head column block
        return jnp.einsum('chd,de->che',
                          w.reshape(C, n_head, Dh), P).reshape(C, C)

    wq = w_attn[:, 0 * C:1 * C] * scale             # (C, H*Dh), heads contiguous on lanes
    wk = w_attn[:, 1 * C:2 * C]
    wv = w_attn[:, 2 * C:3 * C]
    wqr = fold_rot(wq)                              # rotation folded, already scaled
    wkr = fold_rot(wk)

    w5 = jnp.stack([wq, wqr, wk, wkr, wv], axis=0)  # (5, C, H*Dh)
    wp = w_proj.reshape(n_head, Dh, C)              # (H, Dh, C)
    return w5, wp


def _rope_tables(seq_len, head_dim, n_head, base):
    """cos/sin in interleaved layout, tiled across heads -> (2, T, H*Dh)."""
    theta = 1.0 / (base ** (np.arange(0, head_dim, 2, dtype=np.float32) / head_dim))
    m = np.arange(seq_len, dtype=np.float32)
    freqs = np.outer(m, theta)                               # (T, Dh/2)
    cos = np.repeat(np.cos(freqs), 2, axis=-1)               # (T, Dh) interleaved
    sin = np.repeat(np.sin(freqs), 2, axis=-1)
    cos = np.tile(cos, (1, n_head))                          # (T, H*Dh)
    sin = np.tile(sin, (1, n_head))
    return jnp.asarray(np.stack([cos, sin], axis=0))         # (2, T, H*Dh)


# ----------------------------- wrapper -----------------------------------
@functools.partial(jax.jit, static_argnames=("n_head", "base"))
def causal_self_attention(x, w_attn, w_proj, *, n_head: int, base: float = ROPE_BASE):
    B, T, C = x.shape
    Dh = C // n_head

    w5, wp = _prep_params(w_attn, w_proj, n_head)
    cs = _rope_tables(T, Dh, n_head, base)

    kernel = functools.partial(_attn_kernel, n_head=n_head, head_dim=Dh)
    y = pl.pallas_call(
        kernel,
        out_shape=jax.ShapeDtypeStruct((B, T, C), x.dtype),
        grid_spec=pltpu.PrefetchScalarGridSpec(
            num_scalar_prefetch=0,
            grid=(B,),                                       # one batch element per step
            in_specs=[
                pl.BlockSpec((None, T, C), lambda b: (b, 0, 0)),        # x (batch squeezed)
                pl.BlockSpec((5, C, C), lambda b: (0, 0, 0)),           # fused qkv(+rot) weights
                pl.BlockSpec((n_head, Dh, C), lambda b: (0, 0, 0)),     # per-head out-proj blocks
                pl.BlockSpec((2, T, C), lambda b: (0, 0, 0)),           # cos/sin
            ],
            out_specs=pl.BlockSpec((None, T, C), lambda b: (b, 0, 0)),
        ),
        compiler_params=pltpu.CompilerParams(
            dimension_semantics=("parallel",)),              # lets v7x use both TCs
    )(x, w5, wp, cs)
    return y


# ----------------------------- pure-JAX reference -------------------------
def reference(x, w_attn, w_proj, n_head, base=ROPE_BASE):
    B, T, C = x.shape
    Dh = C // n_head
    qkv = x @ w_attn
    q, k, v = jnp.split(qkv, 3, axis=-1)
    q = q.reshape(B, T, n_head, Dh)
    k = k.reshape(B, T, n_head, Dh)
    v = v.reshape(B, T, n_head, Dh).transpose(0, 2, 1, 3)

    theta = 1.0 / (base ** (jnp.arange(0, Dh, 2, dtype=jnp.float32) / Dh))
    freqs = jnp.outer(jnp.arange(T, dtype=jnp.float32), theta)
    cos = jnp.cos(freqs)[None, :, None, :]
    sin = jnp.sin(freqs)[None, :, None, :]

    def rope(z):
        zr = z.reshape(B, T, n_head, Dh // 2, 2)
        z0, z1 = zr[..., 0], zr[..., 1]
        return jnp.stack([z0 * cos - z1 * sin, z1 * cos + z0 * sin],
                         axis=-1).reshape(B, T, n_head, Dh)

    q = rope(q).transpose(0, 2, 1, 3)
    k = rope(k).transpose(0, 2, 1, 3)
    s = jnp.einsum('bhqd,bhkd->bhqk', q, k) / jnp.sqrt(jnp.float32(Dh))
    mask = jnp.tril(jnp.ones((T, T), dtype=bool))
    s = jnp.where(mask, s, -jnp.inf)
    p = jax.nn.softmax(s, axis=-1)
    o = jnp.einsum('bhqk,bhkd->bhqd', p, v)
    o = o.transpose(0, 2, 1, 3).reshape(B, T, C)
    return o @ w_proj


# ----------------------------- main -----------------------------------
if __name__ == "__main__":
    B, T, C, H = 2, 8, N_EMBD, N_HEAD

    key = jax.random.PRNGKey(0)
    kx, ka, kp = jax.random.split(key, 3)
    x = jax.random.normal(kx, (B, T, C), dtype=jnp.float32)
    # nn.Linear(n_embd, 3*n_embd, bias=False): stored here as (C, 3C) so y = x @ W.
    w_attn = 0.02 * jax.random.normal(ka, (C, 3 * C), dtype=jnp.float32)
    w_proj = 0.02 * jax.random.normal(kp, (C, C), dtype=jnp.float32)

    out = causal_self_attention(x, w_attn, w_proj, n_head=H)
    out = jax.block_until_ready(out)

    ref = reference(x, w_attn, w_proj, H)
    np.testing.assert_allclose(np.asarray(out), np.asarray(ref),
                               rtol=1e-4, atol=1e-5)

    print("KERNEL_OK")
</pallas_src>

<mosaic_0001>
module attributes {stable_mosaic.version = 11 : i64} {
  func.func @_attn_kernel(%arg0: i32, %arg1: memref<1x8x32xf32, #tpu.memory_space<vmem>>, %arg2: memref<5x32x32xf32, #tpu.memory_space<vmem>>, %arg3: memref<4x8x32xf32, #tpu.memory_space<vmem>>, %arg4: memref<2x8x32xf32, #tpu.memory_space<vmem>>, %arg5: memref<1x8x32xf32, #tpu.memory_space<vmem>>) attributes {dimension_semantics = [#tpu.dimension_semantics<parallel>], iteration_bounds = array<i64: 2>, scalar_prefetch = 0 : i64, scratch_operands = 0 : i64, tpu.core_type = #tpu.core_type<tc>, window_params = [{transform_indices = @transform_0, window_bounds = array<i64: 1, 8, 32>}, {pipeline_mode = #tpu.pipeline_mode<synchronous>, transform_indices = @transform_1, window_bounds = array<i64: 5, 32, 32>}, {pipeline_mode = #tpu.pipeline_mode<synchronous>, transform_indices = @transform_2, window_bounds = array<i64: 4, 8, 32>}, {pipeline_mode = #tpu.pipeline_mode<synchronous>, transform_indices = @transform_3, window_bounds = array<i64: 2, 8, 32>}, {transform_indices = @transform_4, window_bounds = array<i64: 1, 8, 32>}]} {
    %c0 = arith.constant 0 : index
    %c0_0 = arith.constant 0 : index
    %c0_1 = arith.constant 0 : index
    %0 = vector.load %arg1[%c0, %c0_0, %c0_1] : memref<1x8x32xf32, #tpu.memory_space<vmem>>, vector<1x8x32xf32>
    %1 = vector.shape_cast %0 : vector<1x8x32xf32> to vector<8x32xf32>
    %c0_2 = arith.constant 0 : index
    %c0_3 = arith.constant 0 : index
    %c0_4 = arith.constant 0 : index
    %2 = vector.load %arg4[%c0_2, %c0_3, %c0_4] : memref<2x8x32xf32, #tpu.memory_space<vmem>>, vector<1x8x32xf32>
    %3 = vector.shape_cast %2 : vector<1x8x32xf32> to vector<8x32xf32>
    %c1 = arith.constant 1 : index
    %c0_5 = arith.constant 0 : index
    %c0_6 = arith.constant 0 : index
    %4 = vector.load %arg4[%c1, %c0_5, %c0_6] : memref<2x8x32xf32, #tpu.memory_space<vmem>>, vector<1x8x32xf32>
    %5 = vector.shape_cast %4 : vector<1x8x32xf32> to vector<8x32xf32>
    %c0_7 = arith.constant 0 : index
    %c0_8 = arith.constant 0 : index
    %c0_9 = arith.constant 0 : index
    %6 = vector.load %arg2[%c0_7, %c0_8, %c0_9] : memref<5x32x32xf32, #tpu.memory_space<vmem>>, vector<1x32x32xf32>
    %7 = vector.shape_cast %6 : vector<1x32x32xf32> to vector<32x32xf32>
    %cst = arith.constant dense<0.000000e+00> : vector<8x32xf32>
    %8 = tpu.matmul %1, %7, %cst {dimension_numbers = #tpu.dot_dimension_numbers<[1], [0], [0], [1], [0, 0, 1, 1], [], []>} : vector<8x32xf32>, vector<32x32xf32>, vector<8x32xf32> -> vector<8x32xf32>
    %c1_10 = arith.constant 1 : index
    %c0_11 = arith.constant 0 : index
    %c0_12 = arith.constant 0 : index
    %9 = vector.load %arg2[%c1_10, %c0_11, %c0_12] : memref<5x32x32xf32, #tpu.memory_space<vmem>>, vector<1x32x32xf32>
    %10 = vector.shape_cast %9 : vector<1x32x32xf32> to vector<32x32xf32>
    %cst_13 = arith.constant dense<0.000000e+00> : vector<8x32xf32>
    %11 = tpu.matmul %1, %10, %cst_13 {dimension_numbers = #tpu.dot_dimension_numbers<[1], [0], [0], [1], [0, 0, 1, 1], [], []>} : vector<8x32xf32>, vector<32x32xf32>, vector<8x32xf32> -> vector<8x32xf32>
    %c2 = arith.constant 2 : index
    %c0_14 = arith.constant 0 : index
    %c0_15 = arith.constant 0 : index
    %12 = vector.load %arg2[%c2, %c0_14, %c0_15] : memref<5x32x32xf32, #tpu.memory_space<vmem>>, vector<1x32x32xf32>
    %13 = vector.shape_cast %12 : vector<1x32x32xf32> to vector<32x32xf32>
    %cst_16 = arith.constant dense<0.000000e+00> : vector<8x32xf32>
    %14 = tpu.matmul %1, %13, %cst_16 {dimension_numbers = #tpu.dot_dimension_numbers<[1], [0], [0], [1], [0, 0, 1, 1], [], []>} : vector<8x32xf32>, vector<32x32xf32>, vector<8x32xf32> -> vector<8x32xf32>
    %c3 = arith.constant 3 : index
    %c0_17 = arith.constant 0 : index
    %c0_18 = arith.constant 0 : index
    %15 = vector.load %arg2[%c3, %c0_17, %c0_18] : memref<5x32x32xf32, #tpu.memory_space<vmem>>, vector<1x32x32xf32>
    %16 = vector.shape_cast %15 : vector<1x32x32xf32> to vector<32x32xf32>
    %cst_19 = arith.constant dense<0.000000e+00> : vector<8x32xf32>
    %17 = tpu.matmul %1, %16, %cst_19 {dimension_numbers = #tpu.dot_dimension_numbers<[1], [0], [0], [1], [0, 0, 1, 1], [], []>} : vector<8x32xf32>, vector<32x32xf32>, vector<8x32xf32> -> vector<8x32xf32>
    %c4 = arith.constant 4 : index
    %c0_20 = arith.constant 0 : index
    %c0_21 = arith.constant 0 : index
    %18 = vector.load %arg2[%c4, %c0_20, %c0_21] : memref<5x32x32xf32, #tpu.memory_space<vmem>>, vector<1x32x32xf32>
    %19 = vector.shape_cast %18 : vector<1x32x32xf32> to vector<32x32xf32>
    %cst_22 = arith.constant dense<0.000000e+00> : vector<8x32xf32>
    %20 = tpu.matmul %1, %19, %cst_22 {dimension_numbers = #tpu.dot_dimension_numbers<[1], [0], [0], [1], [0, 0, 1, 1], [], []>} : vector<8x32xf32>, vector<32x32xf32>, vector<8x32xf32> -> vector<8x32xf32>
    %21 = arith.mulf %8, %3 : vector<8x32xf32>
    %22 = arith.mulf %11, %5 : vector<8x32xf32>
    %23 = arith.addf %21, %22 : vector<8x32xf32>
    %24 = arith.mulf %14, %3 : vector<8x32xf32>
    %25 = arith.mulf %17, %5 : vector<8x32xf32>
    %26 = arith.addf %24, %25 : vector<8x32xf32>
    %27 = tpu.iota {dimensions = array<i32: 0>} : vector<8x8xi32>
    %28 = tpu.iota {dimensions = array<i32: 1>} : vector<8x8xi32>
    %29 = arith.cmpi sle, %28, %27 : vector<8x8xi32>
    %cst_23 = arith.constant 0.000000e+00 : f32
    %30 = vector.broadcast %cst_23 : f32 to vector<8x32xf32>
    %31 = vector.extract_strided_slice %23 {offsets = [0, 0], sizes = [8, 8], strides = [1, 1]} : vector<8x32xf32> to vector<8x8xf32>
    %32 = vector.extract_strided_slice %26 {offsets = [0, 0], sizes = [8, 8], strides = [1, 1]} : vector<8x32xf32> to vector<8x8xf32>
    %33 = vector.extract_strided_slice %20 {offsets = [0, 0], sizes = [8, 8], strides = [1, 1]} : vector<8x32xf32> to vector<8x8xf32>
    %cst_24 = arith.constant dense<0.000000e+00> : vector<8x8xf32>
    %34 = tpu.matmul %31, %32, %cst_24 {dimension_numbers = #tpu.dot_dimension_numbers<[1], [1], [0], [0], [0, 0, 1, 0], [], []>} : vector<8x8xf32>, vector<8x8xf32>, vector<8x8xf32> -> vector<8x8xf32>
    %cst_25 = arith.constant -1.000000e+30 : f32
    %35 = vector.broadcast %cst_25 : f32 to vector<8x8xf32>
    %36 = arith.select %29, %34, %35 : vector<8x8xi1>, vector<8x8xf32>
    %cst_26 = arith.constant dense<0xFF800000> : vector<8xf32>
    %37 = vector.multi_reduction <maximumf>, %36, %cst_26 [1] : vector<8x8xf32> to vector<8xf32>
    %38 = vector.shape_cast %37 : vector<8xf32> to vector<8x1xf32>
    %39 = vector.broadcast %38 : vector<8x1xf32> to vector<8x8xf32>
    %40 = arith.subf %36, %39 : vector<8x8xf32>
    %41 = math.exp %40 : vector<8x8xf32>
    %cst_27 = arith.constant dense<0.000000e+00> : vector<8xf32>
    %42 = vector.multi_reduction <add>, %41, %cst_27 [1] : vector<8x8xf32> to vector<8xf32>
    %43 = vector.shape_cast %42 : vector<8xf32> to vector<8x1xf32>
    %cst_28 = arith.constant dense<0.000000e+00> : vector<8x8xf32>
    %44 = tpu.matmul %41, %33, %cst_28 {dimension_numbers = #tpu.dot_dimension_numbers<[1], [0], [0], [1], [0, 0, 1, 1], [], []>} : vector<8x8xf32>, vector<8x8xf32>, vector<8x8xf32> -> vector<8x8xf32>
    %45 = tpu.reciprocal %43 {approx = true} : vector<8x1xf32> -> vector<8x1xf32>
    %46 = arith.mulf %43, %45 : vector<8x1xf32>
    %cst_29 = arith.constant 2.000000e+00 : f32
    %47 = vector.broadcast %cst_29 : f32 to vector<8x1xf32>
    %48 = arith.subf %47, %46 : vector<8x1xf32>
    %49 = arith.mulf %45, %48 : vector<8x1xf32>
    %50 = vector.broadcast %49 : vector<8x1xf32> to vector<8x8xf32>
    %51 = arith.mulf %44, %50 : vector<8x8xf32>
    %c0_30 = arith.constant 0 : index
    %c0_31 = arith.constant 0 : index
    %c0_32 = arith.constant 0 : index
    %52 = vector.load %arg3[%c0_30, %c0_31, %c0_32] : memref<4x8x32xf32, #tpu.memory_space<vmem>>, vector<1x8x32xf32>
    %53 = vector.shape_cast %52 : vector<1x8x32xf32> to vector<8x32xf32>
    %cst_33 = arith.constant dense<0.000000e+00> : vector<8x32xf32>
    %54 = tpu.matmul %51, %53, %cst_33 {dimension_numbers = #tpu.dot_dimension_numbers<[1], [0], [0], [1], [0, 0, 1, 1], [], []>} : vector<8x8xf32>, vector<8x32xf32>, vector<8x32xf32> -> vector<8x32xf32>
    %55 = arith.addf %30, %54 : vector<8x32xf32>
    %56 = vector.extract_strided_slice %23 {offsets = [0, 8], sizes = [8, 8], strides = [1, 1]} : vector<8x32xf32> to vector<8x8xf32>
    %57 = vector.extract_strided_slice %26 {offsets = [0, 8], sizes = [8, 8], strides = [1, 1]} : vector<8x32xf32> to vector<8x8xf32>
    %58 = vector.extract_strided_slice %20 {offsets = [0, 8], sizes = [8, 8], strides = [1, 1]} : vector<8x32xf32> to vector<8x8xf32>
    %cst_34 = arith.constant dense<0.000000e+00> : vector<8x8xf32>
    %59 = tpu.matmul %56, %57, %cst_34 {dimension_numbers = #tpu.dot_dimension_numbers<[1], [1], [0], [0], [0, 0, 1, 0], [], []>} : vector<8x8xf32>, vector<8x8xf32>, vector<8x8xf32> -> vector<8x8xf32>
    %cst_35 = arith.constant -1.000000e+30 : f32
    %60 = vector.broadcast %cst_35 : f32 to vector<8x8xf32>
    %61 = arith.select %29, %59, %60 : vector<8x8xi1>, vector<8x8xf32>
    %cst_36 = arith.constant dense<0xFF800000> : vector<8xf32>
    %62 = vector.multi_reduction <maximumf>, %61, %cst_36 [1] : vector<8x8xf32> to vector<8xf32>
    %63 = vector.shape_cast %62 : vector<8xf32> to vector<8x1xf32>
    %64 = vector.broadcast %63 : vector<8x1xf32> to vector<8x8xf32>
    %65 = arith.subf %61, %64 : vector<8x8xf32>
    %66 = math.exp %65 : vector<8x8xf32>
    %cst_37 = arith.constant dense<0.000000e+00> : vector<8xf32>
    %67 = vector.multi_reduction <add>, %66, %cst_37 [1] : vector<8x8xf32> to vector<8xf32>
    %68 = vector.shape_cast %67 : vector<8xf32> to vector<8x1xf32>
    %cst_38 = arith.constant dense<0.000000e+00> : vector<8x8xf32>
    %69 = tpu.matmul %66, %58, %cst_38 {dimension_numbers = #tpu.dot_dimension_numbers<[1], [0], [0], [1], [0, 0, 1, 1], [], []>} : vector<8x8xf32>, vector<8x8xf32>, vector<8x8xf32> -> vector<8x8xf32>
    %70 = tpu.reciprocal %68 {approx = true} : vector<8x1xf32> -> vector<8x1xf32>
    %71 = arith.mulf %68, %70 : vector<8x1xf32>
    %cst_39 = arith.constant 2.000000e+00 : f32
    %72 = vector.broadcast %cst_39 : f32 to vector<8x1xf32>
    %73 = arith.subf %72, %71 : vector<8x1xf32>
    %74 = arith.mulf %70, %73 : vector<8x1xf32>
    %75 = vector.broadcast %74 : vector<8x1xf32> to vector<8x8xf32>
    %76 = arith.mulf %69, %75 : vector<8x8xf32>
    %c1_40 = arith.constant 1 : index
    %c0_41 = arith.constant 0 : index
    %c0_42 = arith.constant 0 : index
    %77 = vector.load %arg3[%c1_40, %c0_41, %c0_42] : memref<4x8x32xf32, #tpu.memory_space<vmem>>, vector<1x8x32xf32>
    %78 = vector.shape_cast %77 : vector<1x8x32xf32> to vector<8x32xf32>
    %cst_43 = arith.constant dense<0.000000e+00> : vector<8x32xf32>
    %79 = tpu.matmul %76, %78, %cst_43 {dimension_numbers = #tpu.dot_dimension_numbers<[1], [0], [0], [1], [0, 0, 1, 1], [], []>} : vector<8x8xf32>, vector<8x32xf32>, vector<8x32xf32> -> vector<8x32xf32>
    %80 = arith.addf %55, %79 : vector<8x32xf32>
    %81 = vector.extract_strided_slice %23 {offsets = [0, 16], sizes = [8, 8], strides = [1, 1]} : vector<8x32xf32> to vector<8x8xf32>
    %82 = vector.extract_strided_slice %26 {offsets = [0, 16], sizes = [8, 8], strides = [1, 1]} : vector<8x32xf32> to vector<8x8xf32>
    %83 = vector.extract_strided_slice %20 {offsets = [0, 16], sizes = [8, 8], strides = [1, 1]} : vector<8x32xf32> to vector<8x8xf32>
    %cst_44 = arith.constant dense<0.000000e+00> : vector<8x8xf32>
    %84 = tpu.matmul %81, %82, %cst_44 {dimension_numbers = #tpu.dot_dimension_numbers<[1], [1], [0], [0], [0, 0, 1, 0], [], []>} : vector<8x8xf32>, vector<8x8xf32>, vector<8x8xf32> -> vector<8x8xf32>
    %cst_45 = arith.constant -1.000000e+30 : f32
    %85 = vector.broadcast %cst_45 : f32 to vector<8x8xf32>
    %86 = arith.select %29, %84, %85 : vector<8x8xi1>, vector<8x8xf32>
    %cst_46 = arith.constant dense<0xFF800000> : vector<8xf32>
    %87 = vector.multi_reduction <maximumf>, %86, %cst_46 [1] : vector<8x8xf32> to vector<8xf32>
    %88 = vector.shape_cast %87 : vector<8xf32> to vector<8x1xf32>
    %89 = vector.broadcast %88 : vector<8x1xf32> to vector<8x8xf32>
    %90 = arith.subf %86, %89 : vector<8x8xf32>
    %91 = math.exp %90 : vector<8x8xf32>
    %cst_47 = arith.constant dense<0.000000e+00> : vector<8xf32>
    %92 = vector.multi_reduction <add>, %91, %cst_47 [1] : vector<8x8xf32> to vector<8xf32>
    %93 = vector.shape_cast %92 : vector<8xf32> to vector<8x1xf32>
    %cst_48 = arith.constant dense<0.000000e+00> : vector<8x8xf32>
    %94 = tpu.matmul %91, %83, %cst_48 {dimension_numbers = #tpu.dot_dimension_numbers<[1], [0], [0], [1], [0, 0, 1, 1], [], []>} : vector<8x8xf32>, vector<8x8xf32>, vector<8x8xf32> -> vector<8x8xf32>
    %95 = tpu.reciprocal %93 {approx = true} : vector<8x1xf32> -> vector<8x1xf32>
    %96 = arith.mulf %93, %95 : vector<8x1xf32>
    %cst_49 = arith.constant 2.000000e+00 : f32
    %97 = vector.broadcast %cst_49 : f32 to vector<8x1xf32>
    %98 = arith.subf %97, %96 : vector<8x1xf32>
    %99 = arith.mulf %95, %98 : vector<8x1xf32>
    %100 = vector.broadcast %99 : vector<8x1xf32> to vector<8x8xf32>
    %101 = arith.mulf %94, %100 : vector<8x8xf32>
    %c2_50 = arith.constant 2 : index
    %c0_51 = arith.constant 0 : index
    %c0_52 = arith.constant 0 : index
    %102 = vector.load %arg3[%c2_50, %c0_51, %c0_52] : memref<4x8x32xf32, #tpu.memory_space<vmem>>, vector<1x8x32xf32>
    %103 = vector.shape_cast %102 : vector<1x8x32xf32> to vector<8x32xf32>
    %cst_53 = arith.constant dense<0.000000e+00> : vector<8x32xf32>
    %104 = tpu.matmul %101, %103, %cst_53 {dimension_numbers = #tpu.dot_dimension_numbers<[1], [0], [0], [1], [0, 0, 1, 1], [], []>} : vector<8x8xf32>, vector<8x32xf32>, vector<8x32xf32> -> vector<8x32xf32>
    %105 = arith.addf %80, %104 : vector<8x32xf32>
    %106 = vector.extract_strided_slice %23 {offsets = [0, 24], sizes = [8, 8], strides = [1, 1]} : vector<8x32xf32> to vector<8x8xf32>
    %107 = vector.extract_strided_slice %26 {offsets = [0, 24], sizes = [8, 8], strides = [1, 1]} : vector<8x32xf32> to vector<8x8xf32>
    %108 = vector.extract_strided_slice %20 {offsets = [0, 24], sizes = [8, 8], strides = [1, 1]} : vector<8x32xf32> to vector<8x8xf32>
    %cst_54 = arith.constant dense<0.000000e+00> : vector<8x8xf32>
    %109 = tpu.matmul %106, %107, %cst_54 {dimension_numbers = #tpu.dot_dimension_numbers<[1], [1], [0], [0], [0, 0, 1, 0], [], []>} : vector<8x8xf32>, vector<8x8xf32>, vector<8x8xf32> -> vector<8x8xf32>
    %cst_55 = arith.constant -1.000000e+30 : f32
    %110 = vector.broadcast %cst_55 : f32 to vector<8x8xf32>
    %111 = arith.select %29, %109, %110 : vector<8x8xi1>, vector<8x8xf32>
    %cst_56 = arith.constant dense<0xFF800000> : vector<8xf32>
    %112 = vector.multi_reduction <maximumf>, %111, %cst_56 [1] : vector<8x8xf32> to vector<8xf32>
    %113 = vector.shape_cast %112 : vector<8xf32> to vector<8x1xf32>
    %114 = vector.broadcast %113 : vector<8x1xf32> to vector<8x8xf32>
    %115 = arith.subf %111, %114 : vector<8x8xf32>
    %116 = math.exp %115 : vector<8x8xf32>
    %cst_57 = arith.constant dense<0.000000e+00> : vector<8xf32>
    %117 = vector.multi_reduction <add>, %116, %cst_57 [1] : vector<8x8xf32> to vector<8xf32>
    %118 = vector.shape_cast %117 : vector<8xf32> to vector<8x1xf32>
    %cst_58 = arith.constant dense<0.000000e+00> : vector<8x8xf32>
    %119 = tpu.matmul %116, %108, %cst_58 {dimension_numbers = #tpu.dot_dimension_numbers<[1], [0], [0], [1], [0, 0, 1, 1], [], []>} : vector<8x8xf32>, vector<8x8xf32>, vector<8x8xf32> -> vector<8x8xf32>
    %120 = tpu.reciprocal %118 {approx = true} : vector<8x1xf32> -> vector<8x1xf32>
    %121 = arith.mulf %118, %120 : vector<8x1xf32>
    %cst_59 = arith.constant 2.000000e+00 : f32
    %122 = vector.broadcast %cst_59 : f32 to vector<8x1xf32>
    %123 = arith.subf %122, %121 : vector<8x1xf32>
    %124 = arith.mulf %120, %123 : vector<8x1xf32>
    %125 = vector.broadcast %124 : vector<8x1xf32> to vector<8x8xf32>
    %126 = arith.mulf %119, %125 : vector<8x8xf32>
    %c3_60 = arith.constant 3 : index
    %c0_61 = arith.constant 0 : index
    %c0_62 = arith.constant 0 : index
    %127 = vector.load %arg3[%c3_60, %c0_61, %c0_62] : memref<4x8x32xf32, #tpu.memory_space<vmem>>, vector<1x8x32xf32>
    %128 = vector.shape_cast %127 : vector<1x8x32xf32> to vector<8x32xf32>
    %cst_63 = arith.constant dense<0.000000e+00> : vector<8x32xf32>
    %129 = tpu.matmul %126, %128, %cst_63 {dimension_numbers = #tpu.dot_dimension_numbers<[1], [0], [0], [1], [0, 0, 1, 1], [], []>} : vector<8x8xf32>, vector<8x32xf32>, vector<8x32xf32> -> vector<8x32xf32>
    %130 = arith.addf %105, %129 : vector<8x32xf32>
    %c0_64 = arith.constant 0 : index
    %c0_65 = arith.constant 0 : index
    %c0_66 = arith.constant 0 : index
    %131 = vector.load %arg5[%c0_64, %c0_65, %c0_66] : memref<1x8x32xf32, #tpu.memory_space<vmem>>, vector<1x8x32xf32>
    %132 = vector.shape_cast %131 : vector<1x8x32xf32> to vector<8x32xf32>
    %133 = vector.shape_cast %130 : vector<8x32xf32> to vector<1x8x32xf32>
    tpu.vector_store %arg5[%c0_64, %c0_65, %c0_66], %133 {strides = array<i32>} : memref<1x8x32xf32, #tpu.memory_space<vmem>>, vector<1x8x32xf32>,
    return
  }
  func.func @transform_0(%arg0: i32) -> (i32, i32, i32) {
    %c0_i32 = arith.constant 0 : i32
    %c0_i32_0 = arith.constant 0 : i32
    %c0_i32_1 = arith.constant 0 : i32
    return %arg0, %c0_i32, %c0_i32_0 : i32, i32, i32
  }
  func.func @transform_1(%arg0: i32) -> (i32, i32, i32) {
    %c0_i32 = arith.constant 0 : i32
    %c0_i32_0 = arith.constant 0 : i32
    %c0_i32_1 = arith.constant 0 : i32
    %c0_i32_2 = arith.constant 0 : i32
    return %c0_i32, %c0_i32_0, %c0_i32_1 : i32, i32, i32
  }
  func.func @transform_2(%arg0: i32) -> (i32, i32, i32) {
    %c0_i32 = arith.constant 0 : i32
    %c0_i32_0 = arith.constant 0 : i32
    %c0_i32_1 = arith.constant 0 : i32
    %c0_i32_2 = arith.constant 0 : i32
    return %c0_i32, %c0_i32_0, %c0_i32_1 : i32, i32, i32
  }
  func.func @transform_3(%arg0: i32) -> (i32, i32, i32) {
    %c0_i32 = arith.constant 0 : i32
    %c0_i32_0 = arith.constant 0 : i32
    %c0_i32_1 = arith.constant 0 : i32
    %c0_i32_2 = arith.constant 0 : i32
    return %c0_i32, %c0_i32_0, %c0_i32_1 : i32, i32, i32
  }
  func.func @transform_4(%arg0: i32) -> (i32, i32, i32) {
    %c0_i32 = arith.constant 0 : i32
    %c0_i32_0 = arith.constant 0 : i32
    %c0_i32_1 = arith.constant 0 : i32
    return %arg0, %c0_i32, %c0_i32_0 : i32, i32, i32
  }
}

</mosaic_0001>

<llo_original>
// kernel: causal_self_attention.1
$region0: #{causal_self_attention.1}
  #allocation0 [shape = 'u32[]', space=smem, size = 0x4, offset = 0x4, fixed_abs, tag = 'smem constant byte address 0x4 - core index']
  #allocation1 [shape = 'u32[144,128]{1,0:T(1,128)}', space=vmem, size = 0x12000, scoped, tag = 'internal scratch']
  %s0 = inlined_call_operand.vmem [shape: f32[2,8,32], index: 0, kind: input, shape index: {}]
  %s1 = inlined_call_operand.vmem [shape: f32[5,32,32], index: 1, kind: input, shape index: {}]
  %s2 = inlined_call_operand.vmem [shape: f32[4,8,32], index: 2, kind: input, shape index: {}]
  %s3 = inlined_call_operand.vmem [shape: f32[2,8,32], index: 3, kind: input, shape index: {}]
  %s4 = inlined_call_operand.hbm [shape: f32[2,8,32], index: 4, kind: output, shape index: {}]
  %s5 = sld [smem:[#allocation0]]
  $region49: #{causal_self_attention.1} parent=0
    _
  %s7 = ssub.s32 1, %s5
  %s8 = scalar_select 0, %s7, %s5
  $region1: #{causal_self_attention.1} parent=0
    #allocation2 [shape = 'u8[8192]{0}', space=vmem, size = 0x2000, scoped, tag = 'output window, operand 0']
    #allocation3 [shape = 's32[2]{0}', space=sflag, size = 0x8, scoped, tag = 'scoped memory for causal_self_attention.1']
    %9 = vsyncpa [#allocation3], 0
    %s10 = scalar_lea.sflag [#allocation3], 1
    %11 = vsyncpa %s10, 0
    loop: start=0, step=1, limit=4
    $region2: #{causal_self_attention.1} parent=1 // loop_pre_header
      _
    $region3: #{causal_self_attention.1} parent=1 // loop_header
      %s13 = sphi 0, %s17
      %p14 = scmp.ge.s32.totalorder %s13, 4
      %s23 = sphi 0, %s25
      %s26 = sphi 0, %s23
      %s27 = sphi 0, %s26
      %s43 = sphi 0, %s27
      %s47 = sphi 0, %s47
      %s49 = sphi 0, %s47
      %s50 = sphi 0, %s49
      %s64 = sphi 0, %s50
      %s68 = sphi 0, %s68
      %s70 = sphi 0, %s68
      %s71 = sphi 0, %s70
      %s85 = sphi 0, %s71
      %s89 = sphi 0, %s89
      %s91 = sphi 0, %s89
      %s92 = sphi 0, %s91
      %s106 = sphi 0, %s92
      %s112 = sphi 0, %s114
      %s115 = sphi 0, %s112
      %s116 = sphi 0, %s115
      %s132 = sphi 0, %s116
    $region4: #{causal_self_attention.1} parent=1 // loop_header_branch
      %16 = sbr.rel (%p14) target = $region8
    $region5: #{causal_self_attention.1} parent=1 // loop_body
      %s18 = ssub.s32 %s13, 1
      %s19 = ssub.s32 %s13, 2
      %s20 = sadd.s32 %s13, 1
      %s21 = ssub.s32 %s13, %s20
      %p22 = scmp.eq.s32.totalorder %s21, 0
      %s24 = sadd.s32 %s23, 1
      %s25 = scalar_select %p22, %s23, %s24
      %p28 = pneg %p22
      %p29 = scmp.eq.s32.totalorder %s13, 1
      %p30 = por %p28, %p29
      %p31 = scmp.ne.s32.totalorder %s23, %s26
      %p32 = scmp.eq.s32.totalorder %s13, 0
      %p33 = por %p31, %p32
      %p34 = scmp.ne.s32.totalorder %s23, %s26
      %p35 = scmp.eq.s32.totalorder %s18, 1
      %p36 = por %p34, %p35
      %p37 = scmp.ne.s32.totalorder %s26, %s27
      %p38 = scmp.eq.s32.totalorder %s18, 0
      %p39 = por %p37, %p38
      %p40 = scmp.ne.s32.totalorder %s26, %s27
      %p41 = scmp.eq.s32.totalorder %s19, 1
      %p42 = por %p40, %p41
      %p44 = scmp.ne.s32.totalorder %s27, %s43
      %p45 = scmp.eq.s32.totalorder %s19, 0
      %p46 = por %p44, %p45
      %s48 = sadd.s32 %s47, 1
      %p51 = scmp.eq.s32.totalorder %s13, 1
      %p52 = scmp.ne.s32.totalorder %s47, %s49
      %p53 = scmp.eq.s32.totalorder %s13, 0
      %p54 = por %p52, %p53
      %p55 = scmp.ne.s32.totalorder %s47, %s49
      %p56 = scmp.eq.s32.totalorder %s18, 1
      %p57 = por %p55, %p56
      %p58 = scmp.ne.s32.totalorder %s49, %s50
      %p59 = scmp.eq.s32.totalorder %s18, 0
      %p60 = por %p58, %p59
      %p61 = scmp.ne.s32.totalorder %s49, %s50
      %p62 = scmp.eq.s32.totalorder %s19, 1
      %p63 = por %p61, %p62
      %p65 = scmp.ne.s32.totalorder %s50, %s64
      %p66 = scmp.eq.s32.totalorder %s19, 0
      %p67 = por %p65, %p66
      %s69 = sadd.s32 %s68, 1
      %p72 = scmp.eq.s32.totalorder %s13, 1
      %p73 = scmp.ne.s32.totalorder %s68, %s70
      %p74 = scmp.eq.s32.totalorder %s13, 0
      %p75 = por %p73, %p74
      %p76 = scmp.ne.s32.totalorder %s68, %s70
      %p77 = scmp.eq.s32.totalorder %s18, 1
      %p78 = por %p76, %p77
      %p79 = scmp.ne.s32.totalorder %s70, %s71
      %p80 = scmp.eq.s32.totalorder %s18, 0
      %p81 = por %p79, %p80
      %p82 = scmp.ne.s32.totalorder %s70, %s71
      %p83 = scmp.eq.s32.totalorder %s19, 1
      %p84 = por %p82, %p83
      %p86 = scmp.ne.s32.totalorder %s71, %s85
      %p87 = scmp.eq.s32.totalorder %s19, 0
      %p88 = por %p86, %p87
      %s90 = sadd.s32 %s89, 1
      %p93 = scmp.eq.s32.totalorder %s13, 1
      %p94 = scmp.ne.s32.totalorder %s89, %s91
      %p95 = scmp.eq.s32.totalorder %s13, 0
      %p96 = por %p94, %p95
      %p97 = scmp.ne.s32.totalorder %s89, %s91
      %p98 = scmp.eq.s32.totalorder %s18, 1
      %p99 = por %p97, %p98
      %p100 = scmp.ne.s32.totalorder %s91, %s92
      %p101 = scmp.eq.s32.totalorder %s18, 0
      %p102 = por %p100, %p101
      %p103 = scmp.ne.s32.totalorder %s91, %s92
      %p104 = scmp.eq.s32.totalorder %s19, 1
      %p105 = por %p103, %p104
      %p107 = scmp.ne.s32.totalorder %s92, %s106
      %p108 = scmp.eq.s32.totalorder %s19, 0
      %p109 = por %p107, %p108
      %s110 = ssub.s32 %s13, %s20
      %p111 = scmp.eq.s32.totalorder %s110, 0
      %s113 = sadd.s32 %s112, 1
      %s114 = scalar_select %p111, %s112, %s113
      %p117 = pneg %p111
      %p118 = scmp.eq.s32.totalorder %s13, 1
      %p119 = por %p117, %p118
      %p120 = scmp.ne.s32.totalorder %s112, %s115
      %p121 = scmp.eq.s32.totalorder %s13, 0
      %p122 = por %p120, %p121
      %p123 = scmp.ne.s32.totalorder %s112, %s115
      %p124 = scmp.eq.s32.totalorder %s18, 1
      %p125 = por %p123, %p124
      %p126 = scmp.ne.s32.totalorder %s115, %s116
      %p127 = scmp.eq.s32.totalorder %s18, 0
      %p128 = por %p126, %p127
      %p129 = scmp.ne.s32.totalorder %s115, %s116
      %p130 = scmp.eq.s32.totalorder %s19, 1
      %p131 = por %p129, %p130
      %p133 = scmp.ne.s32.totalorder %s116, %s132
      %p134 = scmp.eq.s32.totalorder %s19, 0
      %p135 = por %p133, %p134
      %p136 = scmp.le.s32.totalorder 1, %s13
      %p137 = scmp.lt.s32.totalorder %s13, 3
      %p138 = pnand %p136, %p137
      %p139 = pneg %p138
      // Predicated region
      $region9: #{causal_self_attention.1} parent=5 // pred_check
        _
      $region10: #{causal_self_attention.1} parent=5 // pred_check_branch
        %141 = sbr.rel (%p138) target = $region12
      $region11: #{causal_self_attention.1} parent=5 // pred_region
        %s142 = ssub.s32 %s13, 1
        // Predicated region
        $region13: #{causal_self_attention.1} parent=11 // pred_check
          %p143 = pneg %p60
        $region14: #{causal_self_attention.1} parent=11 // pred_check_branch
          %145 = sbr.rel (%p143) target = $region16
        $region15: #{causal_self_attention.1} parent=11 // pred_region
          _
        $region16: #{causal_self_attention.1} parent=11 // pred_fallthru
          _
        // Predicated region
        $region17: #{causal_self_attention.1} parent=11 // pred_check
          %p146 = pneg %p81
        $region18: #{causal_self_attention.1} parent=11 // pred_check_branch
          %148 = sbr.rel (%p146) target = $region20
        $region19: #{causal_self_attention.1} parent=11 // pred_region
          _
        $region20: #{causal_self_attention.1} parent=11 // pred_fallthru
          _
        // Predicated region
        $region21: #{causal_self_attention.1} parent=11 // pred_check
          %p149 = pneg %p102
        $region22: #{causal_self_attention.1} parent=11 // pred_check_branch
          %151 = sbr.rel (%p149) target = $region24
        $region23: #{causal_self_attention.1} parent=11 // pred_region
          _
        $region24: #{causal_self_attention.1} parent=11 // pred_fallthru
          _
      $region12: #{causal_self_attention.1} parent=5 // pred_fallthru
        _
      %p152 = scmp.lt.s32.totalorder %s13, 2
      // Predicated region
      $region25: #{causal_self_attention.1} parent=5 // pred_check
        %p153 = pneg %p152
      $region26: #{causal_self_attention.1} parent=5 // pred_check_branch
        %155 = sbr.rel (%p153) target = $region28
      $region27: #{causal_self_attention.1} parent=5 // pred_region
        // Predicated region
        $region29: #{causal_self_attention.1} parent=27 // pred_check
          %p156 = pneg %p33
        $region30: #{causal_self_attention.1} parent=27 // pred_check_branch
          %158 = sbr.rel (%p156) target = $region32
        $region31: #{causal_self_attention.1} parent=27 // pred_region
          %p159 = scmp.lt.s32.totalorder %s13, 1
          %s160 = scalar_select %p159, %s13, 1
          %s161 = smul.addr %s160, 8
          %s162 = scalar_lea.vmem %s0, %s161
        $region32: #{causal_self_attention.1} parent=27 // pred_fallthru
          _
      $region28: #{causal_self_attention.1} parent=5 // pred_fallthru
        _
      %p163 = scmp.le.s32.totalorder 1, %s13
      %p164 = scmp.lt.s32.totalorder %s13, 3
      %p165 = pnand %p163, %p164
      %p166 = pneg %p165
      // Predicated region
      $region33: #{causal_self_attention.1} parent=5 // pred_check
        _
      $region34: #{causal_self_attention.1} parent=5 // pred_check_branch
        %168 = sbr.rel (%p165) target = $region36
      $region35: #{causal_self_attention.1} parent=5 // pred_region
        %s169 = ssub.s32 %s13, 1
        %p170 = scmp.lt.s32.totalorder %s18, 1
        %s171 = scalar_select %p170, %s18, 1
        %s172 = smul.addr %s171, 8
        %s173 = scalar_lea.vmem %s0, %s172
        %p174 = pneg %p39
        %p175 = pneg %p36
        %p176 = pneg %p60
        %p177 = pneg %p57
        %p178 = pneg %p81
        %p179 = pneg %p78
        %p180 = pneg %p102
        %p181 = pneg %p99
        %p182 = pneg %p128
        %p183 = pneg %p125
        %s184 = sand.u32 %s115, 1
        %s185 = scalar_lea.sflag [#allocation3], %s184
        %s186 = sand.u32 %s115, 1
        %s187 = smul.addr %s186, 8
        %s188 = scalar_lea.vmem [#allocation2], %s187
        %p189 = scmp.lt.s32.totalorder %s18, 1
        %s190 = scalar_select %p189, %s18, 1
        %s191 = smul.addr %s190, 8
        %s192 = scalar_lea.vmem %s0, %s191
        %v193 = vld [vmem:[%s192] sm:$0xff]
        %v194 = vld [vmem:[%s3] sm:$0xff]
        %s195 = scalar_lea.vmem %s3, 8
        %v196 = vld [vmem:[%s195] sm:$0xff]
        %v197 = vld [vmem:[%s1] sm:$0xff]
        %v198 = vld [vmem:[%s1 + $0x8] sm:$0xff]
        %v199 = vld [vmem:[%s1 + $0x10] sm:$0xff]
        %v200 = vld [vmem:[%s1 + $0x18] sm:$0xff]
        %vm201 = vcmask 261120
        %v203 = vsel %vm201, %v193, 0
        %205 = vmatprep.subr.mxu0 0.0
        %206 = vmatpush1.msra.mxu0 %v197
        %207 = vmatprep.subr.mxu0 0.0
        %208 = vmatpush1.msra.mxu0 %v198
        %209 = vmatprep.subr.mxu0 0.0
        %210 = vmatpush1.msra.mxu0 %v199
        %211 = vmatprep.subr.mxu0 0.0
        %212 = vmatpush1.msra.mxu0 %v200
        %213 = vmatprep.subr.mxu0 0.0
        %214 = vmatpush1.msra.mxu0 0.0
        %215 = vmatprep.subr.mxu0 0.0
        %216 = vmatpush1.msra.mxu0 0.0
        %217 = vmatprep.subr.mxu0 0.0
        %218 = vmatpush1.msra.mxu0 0.0
        %219 = vmatprep.subr.mxu0 0.0
        %220 = vmatpush1.msra.mxu0 0.0
        %221 = vmatprep.subr.mxu0 0.0
        %222 = vmatpush1.msra.mxu0 0.0
        %223 = vmatprep.subr.mxu0 0.0
        %224 = vmatpush1.msra.mxu0 0.0
        %225 = vmatprep.subr.mxu0 0.0
        %226 = vmatpush1.msra.mxu0 0.0
        %227 = vmatprep.subr.mxu0 0.0
        %228 = vmatpush1.msra.mxu0 0.0
        %229 = vmatprep.subr.mxu0 0.0
        %230 = vmatpush1.msra.mxu0 0.0
        %231 = vmatprep.subr.mxu0 0.0
        %232 = vmatpush1.msra.mxu0 0.0
        %233 = vmatprep.subr.mxu0 0.0
        %234 = vmatpush1.msra.mxu0 0.0
        %235 = vmatprep.subr.mxu0 0.0
        %236 = vmatpush1.msra.mxu0 0.0
        %237 = vmatprep.subr.mxu0 0.0
        %238 = vmatpush1.msra.mxu0 0.0
        %239 = vmatprep.subr.mxu0 0.0
        %240 = vmatpush1.msra.mxu0 0.0
        %241 = vmatprep.subr.mxu0 0.0
        %242 = vmatpush1.msra.mxu0 0.0
        %243 = vmatprep.subr.mxu0 0.0
        %244 = vmatpush1.msra.mxu0 0.0
        %245 = vmatprep.subr.mxu0 0.0
        %246 = vmatpush1.msra.mxu0 0.0
        %247 = vmatprep.subr.mxu0 0.0
        %248 = vmatpush1.msra.mxu0 0.0
        %249 = vmatprep.subr.mxu0 0.0
        %250 = vmatpush1.msra.mxu0 0.0
        %251 = vmatprep.subr.mxu0 0.0
        %252 = vmatpush1.msra.mxu0 0.0
        %253 = vmatprep.subr.mxu0 0.0
        %254 = vmatpush1.msra.mxu0 0.0
        %255 = vmatprep.subr.mxu0 0.0
        %256 = vmatpush1.msra.mxu0 0.0
        %257 = vmatprep.subr.mxu0 0.0
        %258 = vmatpush1.msra.mxu0 0.0
        %259 = vmatprep.subr.mxu0 0.0
        %260 = vmatpush1.msra.mxu0 0.0
        %261 = vmatprep.subr.mxu0 0.0
        %262 = vmatpush1.msra.mxu0 0.0
        %263 = vmatprep.subr.mxu0 0.0
        %264 = vmatpush1.msra.mxu0 0.0
        %265 = vmatprep.subr.mxu0 0.0
        %266 = vmatpush1.msra.mxu0 0.0
        %267 = vmatprep.subr.mxu0 0.0
        %268 = vmatpush1.msra.mxu0 0.0
        %269 = vmatprep.mubr.f32.mxu0 0.0
        %270 = vmatmul.mubr.f32.gmra.mrb[0].mxu0 %v203
        %v271 = vpop.f32.mrb[0].mxu0
        %v272 = vadd.f32 0.0, %v271
        %v273 = vpop.f32.mrb[0].mxu0
        %274 = vdwg.mxu0
        %s275 = scalar_lea.vmem %s1, 32
        %v276 = vld [vmem:[%s275] sm:$0xff]
        %v277 = vld [vmem:[%s275 + $0x8] sm:$0xff]
        %v278 = vld [vmem:[%s275 + $0x10] sm:$0xff]
        %v279 = vld [vmem:[%s275 + $0x18] sm:$0xff]
        %280 = vmatprep.subr.mxu0 0.0
        %281 = vmatpush1.msra.mxu0 %v276
        %282 = vmatprep.subr.mxu0 0.0
        %283 = vmatpush1.msra.mxu0 %v277
        %284 = vmatprep.subr.mxu0 0.0
        %285 = vmatpush1.msra.mxu0 %v278
        %286 = vmatprep.subr.mxu0 0.0
        %287 = vmatpush1.msra.mxu0 %v279
        %288 = vmatprep.subr.mxu0 0.0
        %289 = vmatpush1.msra.mxu0 0.0
        %290 = vmatprep.subr.mxu0 0.0
        %291 = vmatpush1.msra.mxu0 0.0
        %292 = vmatprep.subr.mxu0 0.0
        %293 = vmatpush1.msra.mxu0 0.0
        %294 = vmatprep.subr.mxu0 0.0
        %295 = vmatpush1.msra.mxu0 0.0
        %296 = vmatprep.subr.mxu0 0.0
        %297 = vmatpush1.msra.mxu0 0.0
        %298 = vmatprep.subr.mxu0 0.0
        %299 = vmatpush1.msra.mxu0 0.0
        %300 = vmatprep.subr.mxu0 0.0
        %301 = vmatpush1.msra.mxu0 0.0
        %302 = vmatprep.subr.mxu0 0.0
        %303 = vmatpush1.msra.mxu0 0.0
        %304 = vmatprep.subr.mxu0 0.0
        %305 = vmatpush1.msra.mxu0 0.0
        %306 = vmatprep.subr.mxu0 0.0
        %307 = vmatpush1.msra.mxu0 0.0
        %308 = vmatprep.subr.mxu0 0.0
        %309 = vmatpush1.msra.mxu0 0.0
        %310 = vmatprep.subr.mxu0 0.0
        %311 = vmatpush1.msra.mxu0 0.0
        %312 = vmatprep.subr.mxu0 0.0
        %313 = vmatpush1.msra.mxu0 0.0
        %314 = vmatprep.subr.mxu0 0.0
        %315 = vmatpush1.msra.mxu0 0.0
        %316 = vmatprep.subr.mxu0 0.0
        %317 = vmatpush1.msra.mxu0 0.0
        %318 = vmatprep.subr.mxu0 0.0
        %319 = vmatpush1.msra.mxu0 0.0
        %320 = vmatprep.subr.mxu0 0.0
        %321 = vmatpush1.msra.mxu0 0.0
        %322 = vmatprep.subr.mxu0 0.0
        %323 = vmatpush1.msra.mxu0 0.0
        %324 = vmatprep.subr.mxu0 0.0
        %325 = vmatpush1.msra.mxu0 0.0
        %326 = vmatprep.subr.mxu0 0.0
        %327 = vmatpush1.msra.mxu0 0.0
        %328 = vmatprep.subr.mxu0 0.0
        %329 = vmatpush1.msra.mxu0 0.0
        %330 = vmatprep.subr.mxu0 0.0
        %331 = vmatpush1.msra.mxu0 0.0
        %332 = vmatprep.subr.mxu0 0.0
        %333 = vmatpush1.msra.mxu0 0.0
        %334 = vmatprep.subr.mxu0 0.0
        %335 = vmatpush1.msra.mxu0 0.0
        %336 = vmatprep.subr.mxu0 0.0
        %337 = vmatpush1.msra.mxu0 0.0
        %338 = vmatprep.subr.mxu0 0.0
        %339 = vmatpush1.msra.mxu0 0.0
        %340 = vmatprep.subr.mxu0 0.0
        %341 = vmatpush1.msra.mxu0 0.0
        %342 = vmatprep.subr.mxu0 0.0
        %343 = vmatpush1.msra.mxu0 0.0
        %344 = vmatprep.mubr.f32.mxu0 0.0
        %345 = vmatmul.mubr.f32.gmra.mrb[0].mxu0 %v203
        %v346 = vpop.f32.mrb[0].mxu0
        %v347 = vadd.f32 0.0, %v346
        %v348 = vpop.f32.mrb[0].mxu0
        %349 = vdwg.mxu0
        %s350 = scalar_lea.vmem %s1, 64
        %v351 = vld [vmem:[%s350] sm:$0xff]
        %v352 = vld [vmem:[%s350 + $0x8] sm:$0xff]
        %v353 = vld [vmem:[%s350 + $0x10] sm:$0xff]
        %v354 = vld [vmem:[%s350 + $0x18] sm:$0xff]
        %355 = vmatprep.subr.mxu0 0.0
        %356 = vmatpush1.msra.mxu0 %v351
        %357 = vmatprep.subr.mxu0 0.0
        %358 = vmatpush1.msra.mxu0 %v352
        %359 = vmatprep.subr.mxu0 0.0
        %360 = vmatpush1.msra.mxu0 %v353
        %361 = vmatprep.subr.mxu0 0.0
        %362 = vmatpush1.msra.mxu0 %v354
        %363 = vmatprep.subr.mxu0 0.0
        %364 = vmatpush1.msra.mxu0 0.0
        %365 = vmatprep.subr.mxu0 0.0
        %366 = vmatpush1.msra.mxu0 0.0
        %367 = vmatprep.subr.mxu0 0.0
        %368 = vmatpush1.msra.mxu0 0.0
        %369 = vmatprep.subr.mxu0 0.0
        %370 = vmatpush1.msra.mxu0 0.0
        %371 = vmatprep.subr.mxu0 0.0
        %372 = vmatpush1.msra.mxu0 0.0
        %373 = vmatprep.subr.mxu0 0.0
        %374 = vmatpush1.msra.mxu0 0.0
        %375 = vmatprep.subr.mxu0 0.0
        %376 = vmatpush1.msra.mxu0 0.0
        %377 = vmatprep.subr.mxu0 0.0
        %378 = vmatpush1.msra.mxu0 0.0
        %379 = vmatprep.subr.mxu0 0.0
        %380 = vmatpush1.msra.mxu0 0.0
        %381 = vmatprep.subr.mxu0 0.0
        %382 = vmatpush1.msra.mxu0 0.0
        %383 = vmatprep.subr.mxu0 0.0
        %384 = vmatpush1.msra.mxu0 0.0
        %385 = vmatprep.subr.mxu0 0.0
        %386 = vmatpush1.msra.mxu0 0.0
        %387 = vmatprep.subr.mxu0 0.0
        %388 = vmatpush1.msra.mxu0 0.0
        %389 = vmatprep.subr.mxu0 0.0
        %390 = vmatpush1.msra.mxu0 0.0
        %391 = vmatprep.subr.mxu0 0.0
        %392 = vmatpush1.msra.mxu0 0.0
        %393 = vmatprep.subr.mxu0 0.0
        %394 = vmatpush1.msra.mxu0 0.0
        %395 = vmatprep.subr.mxu0 0.0
        %396 = vmatpush1.msra.mxu0 0.0
        %397 = vmatprep.subr.mxu0 0.0
        %398 = vmatpush1.msra.mxu0 0.0
        %399 = vmatprep.subr.mxu0 0.0
        %400 = vmatpush1.msra.mxu0 0.0
        %401 = vmatprep.subr.mxu0 0.0
        %402 = vmatpush1.msra.mxu0 0.0
        %403 = vmatprep.subr.mxu0 0.0
        %404 = vmatpush1.msra.mxu0 0.0
        %405 = vmatprep.subr.mxu0 0.0
        %406 = vmatpush1.msra.mxu0 0.0
        %407 = vmatprep.subr.mxu0 0.0
        %408 = vmatpush1.msra.mxu0 0.0
        %409 = vmatprep.subr.mxu0 0.0
        %410 = vmatpush1.msra.mxu0 0.0
        %411 = vmatprep.subr.mxu0 0.0
        %412 = vmatpush1.msra.mxu0 0.0
        %413 = vmatprep.subr.mxu0 0.0
        %414 = vmatpush1.msra.mxu0 0.0
        %415 = vmatprep.subr.mxu0 0.0
        %416 = vmatpush1.msra.mxu0 0.0
        %417 = vmatprep.subr.mxu0 0.0
        %418 = vmatpush1.msra.mxu0 0.0
        %419 = vmatprep.mubr.f32.mxu0 0.0
        %420 = vmatmul.mubr.f32.gmra.mrb[0].mxu0 %v203
        %v421 = vpop.f32.mrb[0].mxu0
        %v422 = vadd.f32 0.0, %v421
        %v423 = vpop.f32.mrb[0].mxu0
        %424 = vdwg.mxu0
        %s425 = scalar_lea.vmem %s1, 96
        %v426 = vld [vmem:[%s425] sm:$0xff]
        %v427 = vld [vmem:[%s425 + $0x8] sm:$0xff]
        %v428 = vld [vmem:[%s425 + $0x10] sm:$0xff]
        %v429 = vld [vmem:[%s425 + $0x18] sm:$0xff]
        %430 = vmatprep.subr.mxu0 0.0
        %431 = vmatpush1.msra.mxu0 %v426
        %432 = vmatprep.subr.mxu0 0.0
        %433 = vmatpush1.msra.mxu0 %v427
        %434 = vmatprep.subr.mxu0 0.0
        %435 = vmatpush1.msra.mxu0 %v428
        %436 = vmatprep.subr.mxu0 0.0
        %437 = vmatpush1.msra.mxu0 %v429
        %438 = vmatprep.subr.mxu0 0.0
        %439 = vmatpush1.msra.mxu0 0.0
        %440 = vmatprep.subr.mxu0 0.0
        %441 = vmatpush1.msra.mxu0 0.0
        %442 = vmatprep.subr.mxu0 0.0
        %443 = vmatpush1.msra.mxu0 0.0
        %444 = vmatprep.subr.mxu0 0.0
        %445 = vmatpush1.msra.mxu0 0.0
        %446 = vmatprep.subr.mxu0 0.0
        %447 = vmatpush1.msra.mxu0 0.0
        %448 = vmatprep.subr.mxu0 0.0
        %449 = vmatpush1.msra.mxu0 0.0
        %450 = vmatprep.subr.mxu0 0.0
        %451 = vmatpush1.msra.mxu0 0.0
        %452 = vmatprep.subr.mxu0 0.0
        %453 = vmatpush1.msra.mxu0 0.0
        %454 = vmatprep.subr.mxu0 0.0
        %455 = vmatpush1.msra.mxu0 0.0
        %456 = vmatprep.subr.mxu0 0.0
        %457 = vmatpush1.msra.mxu0 0.0
        %458 = vmatprep.subr.mxu0 0.0
        %459 = vmatpush1.msra.mxu0 0.0
        %460 = vmatprep.subr.mxu0 0.0
        %461 = vmatpush1.msra.mxu0 0.0
        %462 = vmatprep.subr.mxu0 0.0
        %463 = vmatpush1.msra.mxu0 0.0
        %464 = vmatprep.subr.mxu0 0.0
        %465 = vmatpush1.msra.mxu0 0.0
        %466 = vmatprep.subr.mxu0 0.0
        %467 = vmatpush1.msra.mxu0 0.0
        %468 = vmatprep.subr.mxu0 0.0
        %469 = vmatpush1.msra.mxu0 0.0
        %470 = vmatprep.subr.mxu0 0.0
        %471 = vmatpush1.msra.mxu0 0.0
        %472 = vmatprep.subr.mxu0 0.0
        %473 = vmatpush1.msra.mxu0 0.0
        %474 = vmatprep.subr.mxu0 0.0
        %475 = vmatpush1.msra.mxu0 0.0
        %476 = vmatprep.subr.mxu0 0.0
        %477 = vmatpush1.msra.mxu0 0.0
        %478 = vmatprep.subr.mxu0 0.0
        %479 = vmatpush1.msra.mxu0 0.0
        %480 = vmatprep.subr.mxu0 0.0
        %481 = vmatpush1.msra.mxu0 0.0
        %482 = vmatprep.subr.mxu0 0.0
        %483 = vmatpush1.msra.mxu0 0.0
        %484 = vmatprep.subr.mxu0 0.0
        %485 = vmatpush1.msra.mxu0 0.0
        %486 = vmatprep.subr.mxu0 0.0
        %487 = vmatpush1.msra.mxu0 0.0
        %488 = vmatprep.subr.mxu0 0.0
        %489 = vmatpush1.msra.mxu0 0.0
        %490 = vmatprep.subr.mxu0 0.0
        %491 = vmatpush1.msra.mxu0 0.0
        %492 = vmatprep.subr.mxu0 0.0
        %493 = vmatpush1.msra.mxu0 0.0
        %494 = vmatprep.mubr.f32.mxu0 0.0
        %495 = vmatmul.mubr.f32.gmra.mrb[0].mxu0 %v203
        %v496 = vpop.f32.mrb[0].mxu0
        %v497 = vadd.f32 0.0, %v496
        %v498 = vpop.f32.mrb[0].mxu0
        %499 = vdwg.mxu0
        %s500 = scalar_lea.vmem %s1, 128
        %v501 = vld [vmem:[%s500] sm:$0xff]
        %v502 = vld [vmem:[%s500 + $0x8] sm:$0xff]
        %v503 = vld [vmem:[%s500 + $0x10] sm:$0xff]
        %v504 = vld [vmem:[%s500 + $0x18] sm:$0xff]
        %505 = vmatprep.subr.mxu0 0.0
        %506 = vmatpush1.msra.mxu0 %v501
        %507 = vmatprep.subr.mxu0 0.0
        %508 = vmatpush1.msra.mxu0 %v502
        %509 = vmatprep.subr.mxu0 0.0
        %510 = vmatpush1.msra.mxu0 %v503
        %511 = vmatprep.subr.mxu0 0.0
        %512 = vmatpush1.msra.mxu0 %v504
        %513 = vmatprep.subr.mxu0 0.0
        %514 = vmatpush1.msra.mxu0 0.0
        %515 = vmatprep.subr.mxu0 0.0
        %516 = vmatpush1.msra.mxu0 0.0
        %517 = vmatprep.subr.mxu0 0.0
        %518 = vmatpush1.msra.mxu0 0.0
        %519 = vmatprep.subr.mxu0 0.0
        %520 = vmatpush1.msra.mxu0 0.0
        %521 = vmatprep.subr.mxu0 0.0
        %522 = vmatpush1.msra.mxu0 0.0
        %523 = vmatprep.subr.mxu0 0.0
        %524 = vmatpush1.msra.mxu0 0.0
        %525 = vmatprep.subr.mxu0 0.0
        %526 = vmatpush1.msra.mxu0 0.0
        %527 = vmatprep.subr.mxu0 0.0
        %528 = vmatpush1.msra.mxu0 0.0
        %529 = vmatprep.subr.mxu0 0.0
        %530 = vmatpush1.msra.mxu0 0.0
        %531 = vmatprep.subr.mxu0 0.0
        %532 = vmatpush1.msra.mxu0 0.0
        %533 = vmatprep.subr.mxu0 0.0
        %534 = vmatpush1.msra.mxu0 0.0
        %535 = vmatprep.subr.mxu0 0.0
        %536 = vmatpush1.msra.mxu0 0.0
        %537 = vmatprep.subr.mxu0 0.0
        %538 = vmatpush1.msra.mxu0 0.0
        %539 = vmatprep.subr.mxu0 0.0
        %540 = vmatpush1.msra.mxu0 0.0
        %541 = vmatprep.subr.mxu0 0.0
        %542 = vmatpush1.msra.mxu0 0.0
        %543 = vmatprep.subr.mxu0 0.0
        %544 = vmatpush1.msra.mxu0 0.0
        %545 = vmatprep.subr.mxu0 0.0
        %546 = vmatpush1.msra.mxu0 0.0
        %547 = vmatprep.subr.mxu0 0.0
        %548 = vmatpush1.msra.mxu0 0.0
        %549 = vmatprep.subr.mxu0 0.0
        %550 = vmatpush1.msra.mxu0 0.0
        %551 = vmatprep.subr.mxu0 0.0
        %552 = vmatpush1.msra.mxu0 0.0
        %553 = vmatprep.subr.mxu0 0.0
        %554 = vmatpush1.msra.mxu0 0.0
        %555 = vmatprep.subr.mxu0 0.0
        %556 = vmatpush1.msra.mxu0 0.0
        %557 = vmatprep.subr.mxu0 0.0
        %558 = vmatpush1.msra.mxu0 0.0
        %559 = vmatprep.subr.mxu0 0.0
        %560 = vmatpush1.msra.mxu0 0.0
        %561 = vmatprep.subr.mxu0 0.0
        %562 = vmatpush1.msra.mxu0 0.0
        %563 = vmatprep.subr.mxu0 0.0
        %564 = vmatpush1.msra.mxu0 0.0
        %565 = vmatprep.subr.mxu0 0.0
        %566 = vmatpush1.msra.mxu0 0.0
        %567 = vmatprep.subr.mxu0 0.0
        %568 = vmatpush1.msra.mxu0 0.0
        %569 = vmatprep.mubr.f32.mxu0 0.0
        %570 = vmatmul.mubr.f32.gmra.mrb[0].mxu0 %v203
        %v571 = vpop.f32.mrb[0].mxu0
        %v572 = vadd.f32 0.0, %v571
        %v573 = vpop.f32.mrb[0].mxu0
        %574 = vdwg.mxu0
        %v575 = vmul.f32 %v272, %v194
        %v576 = vmul.f32 %v347, %v196
        %v577 = vadd.f32 %v575, %v576
        %v578 = vmul.f32 %v422, %v194
        %v579 = vmul.f32 %v497, %v196
        %v580 = vadd.f32 %v578, %v579
        %v581 = vlaneseq
        %v582 = vshrl.u32 %v581, 7
        %v583 = vlaneseq
        %v584 = vand.u32 %v583, 127
        %vm585 = vcmp.le.s32.totalorder %v584, %v582
        %vm586 = vcmask 64512
        %v588 = vsel %vm586, %v577, 0
        %v591 = vsel %vm586, %v580, 0
        %593 = vmatprep.subr.mxu0 0.0
        %594 = vmatpush1.xpose.msra.mxu0 %v591
        %595 = vmatprep.subr.mxu0 0.0
        %596 = vmatpush1.xpose.msra.mxu0 0.0
        %597 = vmatprep.subr.mxu0 0.0
        %598 = vmatpush1.xpose.msra.mxu0 0.0
        %599 = vmatprep.subr.mxu0 0.0
        %600 = vmatpush1.xpose.msra.mxu0 0.0
        %601 = vmatprep.subr.mxu0 0.0
        %602 = vmatpush1.xpose.msra.mxu0 0.0
        %603 = vmatprep.subr.mxu0 0.0
        %604 = vmatpush1.xpose.msra.mxu0 0.0
        %605 = vmatprep.subr.mxu0 0.0
        %606 = vmatpush1.xpose.msra.mxu0 0.0
        %607 = vmatprep.subr.mxu0 0.0
        %608 = vmatpush1.xpose.msra.mxu0 0.0
        %609 = vmatprep.subr.mxu0 0.0
        %610 = vmatpush1.xpose.msra.mxu0 0.0
        %611 = vmatprep.subr.mxu0 0.0
        %612 = vmatpush1.xpose.msra.mxu0 0.0
        %613 = vmatprep.subr.mxu0 0.0
        %614 = vmatpush1.xpose.msra.mxu0 0.0
        %615 = vmatprep.subr.mxu0 0.0
        %616 = vmatpush1.xpose.msra.mxu0 0.0
        %617 = vmatprep.subr.mxu0 0.0
        %618 = vmatpush1.xpose.msra.mxu0 0.0
        %619 = vmatprep.subr.mxu0 0.0
        %620 = vmatpush1.xpose.msra.mxu0 0.0
        %621 = vmatprep.subr.mxu0 0.0
        %622 = vmatpush1.xpose.msra.mxu0 0.0
        %623 = vmatprep.subr.mxu0 0.0
        %624 = vmatpush1.xpose.msra.mxu0 0.0
        %625 = vmatprep.subr.mxu0 0.0
        %626 = vmatpush1.xpose.msra.mxu0 0.0
        %627 = vmatprep.subr.mxu0 0.0
        %628 = vmatpush1.xpose.msra.mxu0 0.0
        %629 = vmatprep.subr.mxu0 0.0
        %630 = vmatpush1.xpose.msra.mxu0 0.0
        %631 = vmatprep.subr.mxu0 0.0
        %632 = vmatpush1.xpose.msra.mxu0 0.0
        %633 = vmatprep.subr.mxu0 0.0
        %634 = vmatpush1.xpose.msra.mxu0 0.0
        %635 = vmatprep.subr.mxu0 0.0
        %636 = vmatpush1.xpose.msra.mxu0 0.0
        %637 = vmatprep.subr.mxu0 0.0
        %638 = vmatpush1.xpose.msra.mxu0 0.0
        %639 = vmatprep.subr.mxu0 0.0
        %640 = vmatpush1.xpose.msra.mxu0 0.0
        %641 = vmatprep.subr.mxu0 0.0
        %642 = vmatpush1.xpose.msra.mxu0 0.0
        %643 = vmatprep.subr.mxu0 0.0
        %644 = vmatpush1.xpose.msra.mxu0 0.0
        %645 = vmatprep.subr.mxu0 0.0
        %646 = vmatpush1.xpose.msra.mxu0 0.0
        %647 = vmatprep.subr.mxu0 0.0
        %648 = vmatpush1.xpose.msra.mxu0 0.0
        %649 = vmatprep.subr.mxu0 0.0
        %650 = vmatpush1.xpose.msra.mxu0 0.0
        %651 = vmatprep.subr.mxu0 0.0
        %652 = vmatpush1.xpose.msra.mxu0 0.0
        %653 = vmatprep.subr.mxu0 0.0
        %654 = vmatpush1.xpose.msra.mxu0 0.0
        %655 = vmatprep.subr.mxu0 0.0
        %656 = vmatpush1.xpose.msra.mxu0 0.0
        %657 = vmatprep.mubr.f32.mxu0 0.0
        %658 = vmatmul.mubr.f32.gmra.mrb[0].mxu0 %v588
        %v659 = vpop.f32.mrb[0].mxu0
        %v660 = vadd.f32 0.0, %v659
        %v661 = vpop.f32.mrb[0].mxu0
        %662 = vdwg.mxu0
        %v663 = vsel %vm585, %v660, -1e+30
        %v664 = vsel %vm586, %v663, -inf
        %665 = vmax.xlane.f32.xlu0 %v664
        %v666 = vpop.xlane.xlu0 %665
        %v667 = vsub.f32 %v663, %v666
        %v668 = vmul.f32 %v667, 1.442695
        %v669 = vpow.pop %v668
        %v670 = vsel %vm586, %v669, 0.0
        %671 = vadd.xlane.f32.xlu0 %v670
        %v672 = vpop.xlane.xlu0 %671
        %v674 = vsel %vm586, %v669, 0
        %676 = vmatprep.subr.mxu0 0.0
        %677 = vmatpush1.msra.mxu0 %v572
        %678 = vmatprep.subr.mxu0 0.0
        %679 = vmatpush1.msra.mxu0 0.0
        %680 = vmatprep.subr.mxu0 0.0
        %681 = vmatpush1.msra.mxu0 0.0
        %682 = vmatprep.subr.mxu0 0.0
        %683 = vmatpush1.msra.mxu0 0.0
        %684 = vmatprep.subr.mxu0 0.0
        %685 = vmatpush1.msra.mxu0 0.0
        %686 = vmatprep.subr.mxu0 0.0
        %687 = vmatpush1.msra.mxu0 0.0
        %688 = vmatprep.subr.mxu0 0.0
        %689 = vmatpush1.msra.mxu0 0.0
        %690 = vmatprep.subr.mxu0 0.0
        %691 = vmatpush1.msra.mxu0 0.0
        %692 = vmatprep.subr.mxu0 0.0
        %693 = vmatpush1.msra.mxu0 0.0
        %694 = vmatprep.subr.mxu0 0.0
        %695 = vmatpush1.msra.mxu0 0.0
        %696 = vmatprep.subr.mxu0 0.0
        %697 = vmatpush1.msra.mxu0 0.0
        %698 = vmatprep.subr.mxu0 0.0
        %699 = vmatpush1.msra.mxu0 0.0
        %700 = vmatprep.subr.mxu0 0.0
        %701 = vmatpush1.msra.mxu0 0.0
        %702 = vmatprep.subr.mxu0 0.0
        %703 = vmatpush1.msra.mxu0 0.0
        %704 = vmatprep.subr.mxu0 0.0
        %705 = vmatpush1.msra.mxu0 0.0
        %706 = vmatprep.subr.mxu0 0.0
        %707 = vmatpush1.msra.mxu0 0.0
        %708 = vmatprep.subr.mxu0 0.0
        %709 = vmatpush1.msra.mxu0 0.0
        %710 = vmatprep.subr.mxu0 0.0
        %711 = vmatpush1.msra.mxu0 0.0
        %712 = vmatprep.subr.mxu0 0.0
        %713 = vmatpush1.msra.mxu0 0.0
        %714 = vmatprep.subr.mxu0 0.0
        %715 = vmatpush1.msra.mxu0 0.0
        %716 = vmatprep.subr.mxu0 0.0
        %717 = vmatpush1.msra.mxu0 0.0
        %718 = vmatprep.subr.mxu0 0.0
        %719 = vmatpush1.msra.mxu0 0.0
        %720 = vmatprep.subr.mxu0 0.0
        %721 = vmatpush1.msra.mxu0 0.0
        %722 = vmatprep.subr.mxu0 0.0
        %723 = vmatpush1.msra.mxu0 0.0
        %724 = vmatprep.subr.mxu0 0.0
        %725 = vmatpush1.msra.mxu0 0.0
        %726 = vmatprep.subr.mxu0 0.0
        %727 = vmatpush1.msra.mxu0 0.0
        %728 = vmatprep.subr.mxu0 0.0
        %729 = vmatpush1.msra.mxu0 0.0
        %730 = vmatprep.subr.mxu0 0.0
        %731 = vmatpush1.msra.mxu0 0.0
        %732 = vmatprep.subr.mxu0 0.0
        %733 = vmatpush1.msra.mxu0 0.0
        %734 = vmatprep.subr.mxu0 0.0
        %735 = vmatpush1.msra.mxu0 0.0
        %736 = vmatprep.subr.mxu0 0.0
        %737 = vmatpush1.msra.mxu0 0.0
        %738 = vmatprep.subr.mxu0 0.0
        %739 = vmatpush1.msra.mxu0 0.0
        %740 = vmatprep.mubr.f32.mxu0 0.0
        %741 = vmatmul.mubr.f32.gmra.mrb[0].mxu0 %v674
        %v742 = vpop.f32.mrb[0].mxu0
        %v743 = vadd.f32 0.0, %v742
        %v744 = vpop.f32.mrb[0].mxu0
        %745 = vdwg.mxu0
        %v746 = vrcp.pop %v672
        %v747 = vmul.f32 %v672, %v746
        %v748 = vsub.f32 2.0, %v747
        %v749 = vmul.f32 %v746, %v748
        %v750 = vmul.f32 %v743, %v749
        %v751 = vld [vmem:[%s2] sm:$0xff]
        %752 = vrot.lane.b32.xlu0 %v577, 120
        %v753 = vpop.permute.xlu0 %752
        %754 = vrot.lane.b32.xlu0 %v580, 120
        %v755 = vpop.permute.xlu0 %754
        %v756 = vsel %vm586, %v753, 0
        %v758 = vsel %vm586, %v755, 0
        %760 = vmatprep.subr.mxu0 0.0
        %761 = vmatpush1.xpose.msra.mxu0 %v758
        %762 = vmatprep.subr.mxu0 0.0
        %763 = vmatpush1.xpose.msra.mxu0 0.0
        %764 = vmatprep.subr.mxu0 0.0
        %765 = vmatpush1.xpose.msra.mxu0 0.0
        %766 = vmatprep.subr.mxu0 0.0
        %767 = vmatpush1.xpose.msra.mxu0 0.0
        %768 = vmatprep.subr.mxu0 0.0
        %769 = vmatpush1.xpose.msra.mxu0 0.0
        %770 = vmatprep.subr.mxu0 0.0
        %771 = vmatpush1.xpose.msra.mxu0 0.0
        %772 = vmatprep.subr.mxu0 0.0
        %773 = vmatpush1.xpose.msra.mxu0 0.0
        %774 = vmatprep.subr.mxu0 0.0
        %775 = vmatpush1.xpose.msra.mxu0 0.0
        %776 = vmatprep.subr.mxu0 0.0
        %777 = vmatpush1.xpose.msra.mxu0 0.0
        %778 = vmatprep.subr.mxu0 0.0
        %779 = vmatpush1.xpose.msra.mxu0 0.0
        %780 = vmatprep.subr.mxu0 0.0
        %781 = vmatpush1.xpose.msra.mxu0 0.0
        %782 = vmatprep.subr.mxu0 0.0
        %783 = vmatpush1.xpose.msra.mxu0 0.0
        %784 = vmatprep.subr.mxu0 0.0
        %785 = vmatpush1.xpose.msra.mxu0 0.0
        %786 = vmatprep.subr.mxu0 0.0
        %787 = vmatpush1.xpose.msra.mxu0 0.0
        %788 = vmatprep.subr.mxu0 0.0
        %789 = vmatpush1.xpose.msra.mxu0 0.0
        %790 = vmatprep.subr.mxu0 0.0
        %791 = vmatpush1.xpose.msra.mxu0 0.0
        %792 = vmatprep.subr.mxu0 0.0
        %793 = vmatpush1.xpose.msra.mxu0 0.0
        %794 = vmatprep.subr.mxu0 0.0
        %795 = vmatpush1.xpose.msra.mxu0 0.0
        %796 = vmatprep.subr.mxu0 0.0
        %797 = vmatpush1.xpose.msra.mxu0 0.0
        %798 = vmatprep.subr.mxu0 0.0
        %799 = vmatpush1.xpose.msra.mxu0 0.0
        %800 = vmatprep.subr.mxu0 0.0
        %801 = vmatpush1.xpose.msra.mxu0 0.0
        %802 = vmatprep.subr.mxu0 0.0
        %803 = vmatpush1.xpose.msra.mxu0 0.0
        %804 = vmatprep.subr.mxu0 0.0
        %805 = vmatpush1.xpose.msra.mxu0 0.0
        %806 = vmatprep.subr.mxu0 0.0
        %807 = vmatpush1.xpose.msra.mxu0 0.0
        %808 = vmatprep.subr.mxu0 0.0
        %809 = vmatpush1.xpose.msra.mxu0 0.0
        %810 = vmatprep.subr.mxu0 0.0
        %811 = vmatpush1.xpose.msra.mxu0 0.0
        %812 = vmatprep.subr.mxu0 0.0
        %813 = vmatpush1.xpose.msra.mxu0 0.0
        %814 = vmatprep.subr.mxu0 0.0
        %815 = vmatpush1.xpose.msra.mxu0 0.0
        %816 = vmatprep.subr.mxu0 0.0
        %817 = vmatpush1.xpose.msra.mxu0 0.0
        %818 = vmatprep.subr.mxu0 0.0
        %819 = vmatpush1.xpose.msra.mxu0 0.0
        %820 = vmatprep.subr.mxu0 0.0
        %821 = vmatpush1.xpose.msra.mxu0 0.0
        %822 = vmatprep.subr.mxu0 0.0
        %823 = vmatpush1.xpose.msra.mxu0 0.0
        %824 = vmatprep.mubr.f32.mxu0 0.0
        %825 = vmatmul.mubr.f32.gmra.mrb[0].mxu0 %v756
        %v826 = vpop.f32.mrb[0].mxu0
        %v827 = vadd.f32 0.0, %v826
        %v828 = vpop.f32.mrb[0].mxu0
        %829 = vdwg.mxu0
        %v830 = vsel %vm585, %v827, -1e+30
        %v831 = vsel %vm586, %v830, -inf
        %832 = vmax.xlane.f32.xlu0 %v831
        %v833 = vpop.xlane.xlu0 %832
        %v834 = vsub.f32 %v830, %v833
        %v835 = vmul.f32 %v834, 1.442695
        %v836 = vpow.pop %v835
        %v837 = vsel %vm586, %v836, 0.0
        %838 = vadd.xlane.f32.xlu0 %v837
        %v839 = vpop.xlane.xlu0 %838
        %841 = vrot.lane.b32.xlu0 %v572, 120
        %v842 = vpop.permute.xlu0 %841
        %v845 = vsel %vm586, %v836, 0
        %847 = vmatprep.subr.mxu0 0.0
        %848 = vmatpush1.msra.mxu0 %v842
        %849 = vmatprep.subr.mxu0 0.0
        %850 = vmatpush1.msra.mxu0 0.0
        %851 = vmatprep.subr.mxu0 0.0
        %852 = vmatpush1.msra.mxu0 0.0
        %853 = vmatprep.subr.mxu0 0.0
        %854 = vmatpush1.msra.mxu0 0.0
        %855 = vmatprep.subr.mxu0 0.0
        %856 = vmatpush1.msra.mxu0 0.0
        %857 = vmatprep.subr.mxu0 0.0
        %858 = vmatpush1.msra.mxu0 0.0
        %859 = vmatprep.subr.mxu0 0.0
        %860 = vmatpush1.msra.mxu0 0.0
        %861 = vmatprep.subr.mxu0 0.0
        %862 = vmatpush1.msra.mxu0 0.0
        %863 = vmatprep.subr.mxu0 0.0
        %864 = vmatpush1.msra.mxu0 0.0
        %865 = vmatprep.subr.mxu0 0.0
        %866 = vmatpush1.msra.mxu0 0.0
        %867 = vmatprep.subr.mxu0 0.0
        %868 = vmatpush1.msra.mxu0 0.0
        %869 = vmatprep.subr.mxu0 0.0
        %870 = vmatpush1.msra.mxu0 0.0
        %871 = vmatprep.subr.mxu0 0.0
        %872 = vmatpush1.msra.mxu0 0.0
        %873 = vmatprep.subr.mxu0 0.0
        %874 = vmatpush1.msra.mxu0 0.0
        %875 = vmatprep.subr.mxu0 0.0
        %876 = vmatpush1.msra.mxu0 0.0
        %877 = vmatprep.subr.mxu0 0.0
        %878 = vmatpush1.msra.mxu0 0.0
        %879 = vmatprep.subr.mxu0 0.0
        %880 = vmatpush1.msra.mxu0 0.0
        %881 = vmatprep.subr.mxu0 0.0
        %882 = vmatpush1.msra.mxu0 0.0
        %883 = vmatprep.subr.mxu0 0.0
        %884 = vmatpush1.msra.mxu0 0.0
        %885 = vmatprep.subr.mxu0 0.0
        %886 = vmatpush1.msra.mxu0 0.0
        %887 = vmatprep.subr.mxu0 0.0
        %888 = vmatpush1.msra.mxu0 0.0
        %889 = vmatprep.subr.mxu0 0.0
        %890 = vmatpush1.msra.mxu0 0.0
        %891 = vmatprep.subr.mxu0 0.0
        %892 = vmatpush1.msra.mxu0 0.0
        %893 = vmatprep.subr.mxu0 0.0
        %894 = vmatpush1.msra.mxu0 0.0
        %895 = vmatprep.subr.mxu0 0.0
        %896 = vmatpush1.msra.mxu0 0.0
        %897 = vmatprep.subr.mxu0 0.0
        %898 = vmatpush1.msra.mxu0 0.0
        %899 = vmatprep.subr.mxu0 0.0
        %900 = vmatpush1.msra.mxu0 0.0
        %901 = vmatprep.subr.mxu0 0.0
        %902 = vmatpush1.msra.mxu0 0.0
        %903 = vmatprep.subr.mxu0 0.0
        %904 = vmatpush1.msra.mxu0 0.0
        %905 = vmatprep.subr.mxu0 0.0
        %906 = vmatpush1.msra.mxu0 0.0
        %907 = vmatprep.subr.mxu0 0.0
        %908 = vmatpush1.msra.mxu0 0.0
        %909 = vmatprep.subr.mxu0 0.0
        %910 = vmatpush1.msra.mxu0 0.0
        %911 = vmatprep.mubr.f32.mxu0 0.0
        %912 = vmatmul.mubr.f32.gmra.mrb[0].mxu0 %v845
        %v913 = vpop.f32.mrb[0].mxu0
        %v914 = vadd.f32 0.0, %v913
        %v915 = vpop.f32.mrb[0].mxu0
        %916 = vdwg.mxu0
        %v917 = vrcp.pop %v839
        %v918 = vmul.f32 %v839, %v917
        %v919 = vsub.f32 2.0, %v918
        %v920 = vmul.f32 %v917, %v919
        %v921 = vmul.f32 %v914, %v920
        %s922 = scalar_lea.vmem %s2, 8
        %v923 = vld [vmem:[%s922] sm:$0xff]
        %v925 = vsel %vm586, %v921, 0
        %927 = vmatprep.subr.mxu0 0.0
        %928 = vmatpush1.msra.mxu0 %v923
        %929 = vmatprep.subr.mxu0 0.0
        %930 = vmatpush1.msra.mxu0 0.0
        %931 = vmatprep.subr.mxu0 0.0
        %932 = vmatpush1.msra.mxu0 0.0
        %933 = vmatprep.subr.mxu0 0.0
        %934 = vmatpush1.msra.mxu0 0.0
        %935 = vmatprep.subr.mxu0 0.0
        %936 = vmatpush1.msra.mxu0 0.0
        %937 = vmatprep.subr.mxu0 0.0
        %938 = vmatpush1.msra.mxu0 0.0
        %939 = vmatprep.subr.mxu0 0.0
        %940 = vmatpush1.msra.mxu0 0.0
        %941 = vmatprep.subr.mxu0 0.0
        %942 = vmatpush1.msra.mxu0 0.0
        %943 = vmatprep.subr.mxu0 0.0
        %944 = vmatpush1.msra.mxu0 0.0
        %945 = vmatprep.subr.mxu0 0.0
        %946 = vmatpush1.msra.mxu0 0.0
        %947 = vmatprep.subr.mxu0 0.0
        %948 = vmatpush1.msra.mxu0 0.0
        %949 = vmatprep.subr.mxu0 0.0
        %950 = vmatpush1.msra.mxu0 0.0
        %951 = vmatprep.subr.mxu0 0.0
        %952 = vmatpush1.msra.mxu0 0.0
        %953 = vmatprep.subr.mxu0 0.0
        %954 = vmatpush1.msra.mxu0 0.0
        %955 = vmatprep.subr.mxu0 0.0
        %956 = vmatpush1.msra.mxu0 0.0
        %957 = vmatprep.subr.mxu0 0.0
        %958 = vmatpush1.msra.mxu0 0.0
        %959 = vmatprep.subr.mxu0 0.0
        %960 = vmatpush1.msra.mxu0 0.0
        %961 = vmatprep.subr.mxu0 0.0
        %962 = vmatpush1.msra.mxu0 0.0
        %963 = vmatprep.subr.mxu0 0.0
        %964 = vmatpush1.msra.mxu0 0.0
        %965 = vmatprep.subr.mxu0 0.0
        %966 = vmatpush1.msra.mxu0 0.0
        %967 = vmatprep.subr.mxu0 0.0
        %968 = vmatpush1.msra.mxu0 0.0
        %969 = vmatprep.subr.mxu0 0.0
        %970 = vmatpush1.msra.mxu0 0.0
        %971 = vmatprep.subr.mxu0 0.0
        %972 = vmatpush1.msra.mxu0 0.0
        %973 = vmatprep.subr.mxu0 0.0
        %974 = vmatpush1.msra.mxu0 0.0
        %975 = vmatprep.subr.mxu0 0.0
        %976 = vmatpush1.msra.mxu0 0.0
        %977 = vmatprep.subr.mxu0 0.0
        %978 = vmatpush1.msra.mxu0 0.0
        %979 = vmatprep.subr.mxu0 0.0
        %980 = vmatpush1.msra.mxu0 0.0
        %981 = vmatprep.subr.mxu0 0.0
        %982 = vmatpush1.msra.mxu0 0.0
        %983 = vmatprep.subr.mxu0 0.0
        %984 = vmatpush1.msra.mxu0 0.0
        %985 = vmatprep.subr.mxu0 0.0
        %986 = vmatpush1.msra.mxu0 0.0
        %987 = vmatprep.subr.mxu0 0.0
        %988 = vmatpush1.msra.mxu0 0.0
        %989 = vmatprep.subr.mxu0 0.0
        %990 = vmatpush1.msra.mxu0 0.0
        %991 = vmatprep.mubr.f32.mxu0 0.0
        %992 = vmatmul.mubr.f32.gmra.mrb[0].mxu0 %v925
        %v993 = vpop.f32.mrb[0].mxu0
        %v994 = vadd.f32 0.0, %v993
        %v995 = vpop.f32.mrb[0].mxu0
        %996 = vdwg.mxu0
        %v998 = vsel %vm586, %v750, 0
        %1000 = vmatprep.subr.mxu0 0.0
        %1001 = vmatpush1.msra.mxu0 %v751
        %1002 = vmatprep.subr.mxu0 0.0
        %1003 = vmatpush1.msra.mxu0 0.0
        %1004 = vmatprep.subr.mxu0 0.0
        %1005 = vmatpush1.msra.mxu0 0.0
        %1006 = vmatprep.subr.mxu0 0.0
        %1007 = vmatpush1.msra.mxu0 0.0
        %1008 = vmatprep.subr.mxu0 0.0
        %1009 = vmatpush1.msra.mxu0 0.0
        %1010 = vmatprep.subr.mxu0 0.0
        %1011 = vmatpush1.msra.mxu0 0.0
        %1012 = vmatprep.subr.mxu0 0.0
        %1013 = vmatpush1.msra.mxu0 0.0
        %1014 = vmatprep.subr.mxu0 0.0
        %1015 = vmatpush1.msra.mxu0 0.0
        %1016 = vmatprep.subr.mxu0 0.0
        %1017 = vmatpush1.msra.mxu0 0.0
        %1018 = vmatprep.subr.mxu0 0.0
        %1019 = vmatpush1.msra.mxu0 0.0
        %1020 = vmatprep.subr.mxu0 0.0
        %1021 = vmatpush1.msra.mxu0 0.0
        %1022 = vmatprep.subr.mxu0 0.0
        %1023 = vmatpush1.msra.mxu0 0.0
        %1024 = vmatprep.subr.mxu0 0.0
        %1025 = vmatpush1.msra.mxu0 0.0
        %1026 = vmatprep.subr.mxu0 0.0
        %1027 = vmatpush1.msra.mxu0 0.0
        %1028 = vmatprep.subr.mxu0 0.0
        %1029 = vmatpush1.msra.mxu0 0.0
        %1030 = vmatprep.subr.mxu0 0.0
        %1031 = vmatpush1.msra.mxu0 0.0
        %1032 = vmatprep.subr.mxu0 0.0
        %1033 = vmatpush1.msra.mxu0 0.0
        %1034 = vmatprep.subr.mxu0 0.0
        %1035 = vmatpush1.msra.mxu0 0.0
        %1036 = vmatprep.subr.mxu0 0.0
        %1037 = vmatpush1.msra.mxu0 0.0
        %1038 = vmatprep.subr.mxu0 0.0
        %1039 = vmatpush1.msra.mxu0 0.0
        %1040 = vmatprep.subr.mxu0 0.0
        %1041 = vmatpush1.msra.mxu0 0.0
        %1042 = vmatprep.subr.mxu0 0.0
        %1043 = vmatpush1.msra.mxu0 0.0
        %1044 = vmatprep.subr.mxu0 0.0
        %1045 = vmatpush1.msra.mxu0 0.0
        %1046 = vmatprep.subr.mxu0 0.0
        %1047 = vmatpush1.msra.mxu0 0.0
        %1048 = vmatprep.subr.mxu0 0.0
        %1049 = vmatpush1.msra.mxu0 0.0
        %1050 = vmatprep.subr.mxu0 0.0
        %1051 = vmatpush1.msra.mxu0 0.0
        %1052 = vmatprep.subr.mxu0 0.0
        %1053 = vmatpush1.msra.mxu0 0.0
        %1054 = vmatprep.subr.mxu0 0.0
        %1055 = vmatpush1.msra.mxu0 0.0
        %1056 = vmatprep.subr.mxu0 0.0
        %1057 = vmatpush1.msra.mxu0 0.0
        %1058 = vmatprep.subr.mxu0 0.0
        %1059 = vmatpush1.msra.mxu0 0.0
        %1060 = vmatprep.subr.mxu0 0.0
        %1061 = vmatpush1.msra.mxu0 0.0
        %1062 = vmatprep.subr.mxu0 0.0
        %1063 = vmatpush1.msra.mxu0 0.0
        %1064 = vmatprep.mubr.f32.mxu0 0.0
        %1065 = vmatmul.mubr.f32.gmra.mrb[0].mxu0 %v998
        %v1066 = vpop.f32.mrb[0].mxu0
        %v1067 = vadd.f32 %v994, %v1066
        %v1068 = vpop.f32.mrb[0].mxu0
        %1069 = vdwg.mxu0
        %1070 = vrot.lane.b32.xlu0 %v577, 112
        %v1071 = vpop.permute.xlu0 %1070
        %1072 = vrot.lane.b32.xlu0 %v580, 112
        %v1073 = vpop.permute.xlu0 %1072
        %v1074 = vsel %vm586, %v1071, 0
        %v1076 = vsel %vm586, %v1073, 0
        %1078 = vmatprep.subr.mxu0 0.0
        %1079 = vmatpush1.xpose.msra.mxu0 %v1076
        %1080 = vmatprep.subr.mxu0 0.0
        %1081 = vmatpush1.xpose.msra.mxu0 0.0
        %1082 = vmatprep.subr.mxu0 0.0
        %1083 = vmatpush1.xpose.msra.mxu0 0.0
        %1084 = vmatprep.subr.mxu0 0.0
        %1085 = vmatpush1.xpose.msra.mxu0 0.0
        %1086 = vmatprep.subr.mxu0 0.0
        %1087 = vmatpush1.xpose.msra.mxu0 0.0
        %1088 = vmatprep.subr.mxu0 0.0
        %1089 = vmatpush1.xpose.msra.mxu0 0.0
        %1090 = vmatprep.subr.mxu0 0.0
        %1091 = vmatpush1.xpose.msra.mxu0 0.0
        %1092 = vmatprep.subr.mxu0 0.0
        %1093 = vmatpush1.xpose.msra.mxu0 0.0
        %1094 = vmatprep.subr.mxu0 0.0
        %1095 = vmatpush1.xpose.msra.mxu0 0.0
        %1096 = vmatprep.subr.mxu0 0.0
        %1097 = vmatpush1.xpose.msra.mxu0 0.0
        %1098 = vmatprep.subr.mxu0 0.0
        %1099 = vmatpush1.xpose.msra.mxu0 0.0
        %1100 = vmatprep.subr.mxu0 0.0
        %1101 = vmatpush1.xpose.msra.mxu0 0.0
        %1102 = vmatprep.subr.mxu0 0.0
        %1103 = vmatpush1.xpose.msra.mxu0 0.0
        %1104 = vmatprep.subr.mxu0 0.0
        %1105 = vmatpush1.xpose.msra.mxu0 0.0
        %1106 = vmatprep.subr.mxu0 0.0
        %1107 = vmatpush1.xpose.msra.mxu0 0.0
        %1108 = vmatprep.subr.mxu0 0.0
        %1109 = vmatpush1.xpose.msra.mxu0 0.0
        %1110 = vmatprep.subr.mxu0 0.0
        %1111 = vmatpush1.xpose.msra.mxu0 0.0
        %1112 = vmatprep.subr.mxu0 0.0
        %1113 = vmatpush1.xpose.msra.mxu0 0.0
        %1114 = vmatprep.subr.mxu0 0.0
        %1115 = vmatpush1.xpose.msra.mxu0 0.0
        %1116 = vmatprep.subr.mxu0 0.0
        %1117 = vmatpush1.xpose.msra.mxu0 0.0
        %1118 = vmatprep.subr.mxu0 0.0
        %1119 = vmatpush1.xpose.msra.mxu0 0.0
        %1120 = vmatprep.subr.mxu0 0.0
        %1121 = vmatpush1.xpose.msra.mxu0 0.0
        %1122 = vmatprep.subr.mxu0 0.0
        %1123 = vmatpush1.xpose.msra.mxu0 0.0
        %1124 = vmatprep.subr.mxu0 0.0
        %1125 = vmatpush1.xpose.msra.mxu0 0.0
        %1126 = vmatprep.subr.mxu0 0.0
        %1127 = vmatpush1.xpose.msra.mxu0 0.0
        %1128 = vmatprep.subr.mxu0 0.0
        %1129 = vmatpush1.xpose.msra.mxu0 0.0
        %1130 = vmatprep.subr.mxu0 0.0
        %1131 = vmatpush1.xpose.msra.mxu0 0.0
        %1132 = vmatprep.subr.mxu0 0.0
        %1133 = vmatpush1.xpose.msra.mxu0 0.0
        %1134 = vmatprep.subr.mxu0 0.0
        %1135 = vmatpush1.xpose.msra.mxu0 0.0
        %1136 = vmatprep.subr.mxu0 0.0
        %1137 = vmatpush1.xpose.msra.mxu0 0.0
        %1138 = vmatprep.subr.mxu0 0.0
        %1139 = vmatpush1.xpose.msra.mxu0 0.0
        %1140 = vmatprep.subr.mxu0 0.0
        %1141 = vmatpush1.xpose.msra.mxu0 0.0
        %1142 = vmatprep.mubr.f32.mxu0 0.0
        %1143 = vmatmul.mubr.f32.gmra.mrb[0].mxu0 %v1074
        %v1144 = vpop.f32.mrb[0].mxu0
        %v1145 = vadd.f32 0.0, %v1144
        %v1146 = vpop.f32.mrb[0].mxu0
        %1147 = vdwg.mxu0
        %v1148 = vsel %vm585, %v1145, -1e+30
        %v1149 = vsel %vm586, %v1148, -inf
        %1150 = vmax.xlane.f32.xlu0 %v1149
        %v1151 = vpop.xlane.xlu0 %1150
        %v1152 = vsub.f32 %v1148, %v1151
        %v1153 = vmul.f32 %v1152, 1.442695
        %v1154 = vpow.pop %v1153
        %v1155 = vsel %vm586, %v1154, 0.0
        %1156 = vadd.xlane.f32.xlu0 %v1155
        %v1157 = vpop.xlane.xlu0 %1156
        %1158 = vrot.lane.b32.xlu0 %v572, 112
        %v1159 = vpop.permute.xlu0 %1158
        %v1162 = vsel %vm586, %v1154, 0
        %1164 = vmatprep.subr.mxu0 0.0
        %1165 = vmatpush1.msra.mxu0 %v1159
        %1166 = vmatprep.subr.mxu0 0.0
        %1167 = vmatpush1.msra.mxu0 0.0
        %1168 = vmatprep.subr.mxu0 0.0
        %1169 = vmatpush1.msra.mxu0 0.0
        %1170 = vmatprep.subr.mxu0 0.0
        %1171 = vmatpush1.msra.mxu0 0.0
        %1172 = vmatprep.subr.mxu0 0.0
        %1173 = vmatpush1.msra.mxu0 0.0
        %1174 = vmatprep.subr.mxu0 0.0
        %1175 = vmatpush1.msra.mxu0 0.0
        %1176 = vmatprep.subr.mxu0 0.0
        %1177 = vmatpush1.msra.mxu0 0.0
        %1178 = vmatprep.subr.mxu0 0.0
        %1179 = vmatpush1.msra.mxu0 0.0
        %1180 = vmatprep.subr.mxu0 0.0
        %1181 = vmatpush1.msra.mxu0 0.0
        %1182 = vmatprep.subr.mxu0 0.0
        %1183 = vmatpush1.msra.mxu0 0.0
        %1184 = vmatprep.subr.mxu0 0.0
        %1185 = vmatpush1.msra.mxu0 0.0
        %1186 = vmatprep.subr.mxu0 0.0
        %1187 = vmatpush1.msra.mxu0 0.0
        %1188 = vmatprep.subr.mxu0 0.0
        %1189 = vmatpush1.msra.mxu0 0.0
        %1190 = vmatprep.subr.mxu0 0.0
        %1191 = vmatpush1.msra.mxu0 0.0
        %1192 = vmatprep.subr.mxu0 0.0
        %1193 = vmatpush1.msra.mxu0 0.0
        %1194 = vmatprep.subr.mxu0 0.0
        %1195 = vmatpush1.msra.mxu0 0.0
        %1196 = vmatprep.subr.mxu0 0.0
        %1197 = vmatpush1.msra.mxu0 0.0
        %1198 = vmatprep.subr.mxu0 0.0
        %1199 = vmatpush1.msra.mxu0 0.0
        %1200 = vmatprep.subr.mxu0 0.0
        %1201 = vmatpush1.msra.mxu0 0.0
        %1202 = vmatprep.subr.mxu0 0.0
        %1203 = vmatpush1.msra.mxu0 0.0
        %1204 = vmatprep.subr.mxu0 0.0
        %1205 = vmatpush1.msra.mxu0 0.0
        %1206 = vmatprep.subr.mxu0 0.0
        %1207 = vmatpush1.msra.mxu0 0.0
        %1208 = vmatprep.subr.mxu0 0.0
        %1209 = vmatpush1.msra.mxu0 0.0
        %1210 = vmatprep.subr.mxu0 0.0
        %1211 = vmatpush1.msra.mxu0 0.0
        %1212 = vmatprep.subr.mxu0 0.0
        %1213 = vmatpush1.msra.mxu0 0.0
        %1214 = vmatprep.subr.mxu0 0.0
        %1215 = vmatpush1.msra.mxu0 0.0
        %1216 = vmatprep.subr.mxu0 0.0
        %1217 = vmatpush1.msra.mxu0 0.0
        %1218 = vmatprep.subr.mxu0 0.0
        %1219 = vmatpush1.msra.mxu0 0.0
        %1220 = vmatprep.subr.mxu0 0.0
        %1221 = vmatpush1.msra.mxu0 0.0
        %1222 = vmatprep.subr.mxu0 0.0
        %1223 = vmatpush1.msra.mxu0 0.0
        %1224 = vmatprep.subr.mxu0 0.0
        %1225 = vmatpush1.msra.mxu0 0.0
        %1226 = vmatprep.subr.mxu0 0.0
        %1227 = vmatpush1.msra.mxu0 0.0
        %1228 = vmatprep.mubr.f32.mxu0 0.0
        %1229 = vmatmul.mubr.f32.gmra.mrb[0].mxu0 %v1162
        %v1230 = vpop.f32.mrb[0].mxu0
        %v1231 = vadd.f32 0.0, %v1230
        %v1232 = vpop.f32.mrb[0].mxu0
        %1233 = vdwg.mxu0
        %v1234 = vrcp.pop %v1157
        %v1235 = vmul.f32 %v1157, %v1234
        %v1236 = vsub.f32 2.0, %v1235
        %v1237 = vmul.f32 %v1234, %v1236
        %v1238 = vmul.f32 %v1231, %v1237
        %s1239 = scalar_lea.vmem %s2, 16
        %v1240 = vld [vmem:[%s1239] sm:$0xff]
        %v1242 = vsel %vm586, %v1238, 0
        %1244 = vmatprep.subr.mxu0 0.0
        %1245 = vmatpush1.msra.mxu0 %v1240
        %1246 = vmatprep.subr.mxu0 0.0
        %1247 = vmatpush1.msra.mxu0 0.0
        %1248 = vmatprep.subr.mxu0 0.0
        %1249 = vmatpush1.msra.mxu0 0.0
        %1250 = vmatprep.subr.mxu0 0.0
        %1251 = vmatpush1.msra.mxu0 0.0
        %1252 = vmatprep.subr.mxu0 0.0
        %1253 = vmatpush1.msra.mxu0 0.0
        %1254 = vmatprep.subr.mxu0 0.0
        %1255 = vmatpush1.msra.mxu0 0.0
        %1256 = vmatprep.subr.mxu0 0.0
        %1257 = vmatpush1.msra.mxu0 0.0
        %1258 = vmatprep.subr.mxu0 0.0
        %1259 = vmatpush1.msra.mxu0 0.0
        %1260 = vmatprep.subr.mxu0 0.0
        %1261 = vmatpush1.msra.mxu0 0.0
        %1262 = vmatprep.subr.mxu0 0.0
        %1263 = vmatpush1.msra.mxu0 0.0
        %1264 = vmatprep.subr.mxu0 0.0
        %1265 = vmatpush1.msra.mxu0 0.0
        %1266 = vmatprep.subr.mxu0 0.0
        %1267 = vmatpush1.msra.mxu0 0.0
        %1268 = vmatprep.subr.mxu0 0.0
        %1269 = vmatpush1.msra.mxu0 0.0
        %1270 = vmatprep.subr.mxu0 0.0
        %1271 = vmatpush1.msra.mxu0 0.0
        %1272 = vmatprep.subr.mxu0 0.0
        %1273 = vmatpush1.msra.mxu0 0.0
        %1274 = vmatprep.subr.mxu0 0.0
        %1275 = vmatpush1.msra.mxu0 0.0
        %1276 = vmatprep.subr.mxu0 0.0
        %1277 = vmatpush1.msra.mxu0 0.0
        %1278 = vmatprep.subr.mxu0 0.0
        %1279 = vmatpush1.msra.mxu0 0.0
        %1280 = vmatprep.subr.mxu0 0.0
        %1281 = vmatpush1.msra.mxu0 0.0
        %1282 = vmatprep.subr.mxu0 0.0
        %1283 = vmatpush1.msra.mxu0 0.0
        %1284 = vmatprep.subr.mxu0 0.0
        %1285 = vmatpush1.msra.mxu0 0.0
        %1286 = vmatprep.subr.mxu0 0.0
        %1287 = vmatpush1.msra.mxu0 0.0
        %1288 = vmatprep.subr.mxu0 0.0
        %1289 = vmatpush1.msra.mxu0 0.0
        %1290 = vmatprep.subr.mxu0 0.0
        %1291 = vmatpush1.msra.mxu0 0.0
        %1292 = vmatprep.subr.mxu0 0.0
        %1293 = vmatpush1.msra.mxu0 0.0
        %1294 = vmatprep.subr.mxu0 0.0
        %1295 = vmatpush1.msra.mxu0 0.0
        %1296 = vmatprep.subr.mxu0 0.0
        %1297 = vmatpush1.msra.mxu0 0.0
        %1298 = vmatprep.subr.mxu0 0.0
        %1299 = vmatpush1.msra.mxu0 0.0
        %1300 = vmatprep.subr.mxu0 0.0
        %1301 = vmatpush1.msra.mxu0 0.0
        %1302 = vmatprep.subr.mxu0 0.0
        %1303 = vmatpush1.msra.mxu0 0.0
        %1304 = vmatprep.subr.mxu0 0.0
        %1305 = vmatpush1.msra.mxu0 0.0
        %1306 = vmatprep.subr.mxu0 0.0
        %1307 = vmatpush1.msra.mxu0 0.0
        %1308 = vmatprep.mubr.f32.mxu0 0.0
        %1309 = vmatmul.mubr.f32.gmra.mrb[0].mxu0 %v1242
        %v1310 = vpop.f32.mrb[0].mxu0
        %v1311 = vadd.f32 0.0, %v1310
        %v1312 = vpop.f32.mrb[0].mxu0
        %1313 = vdwg.mxu0
        %v1314 = vadd.f32 %v1067, %v1311
        %1315 = vrot.lane.b32.xlu0 %v577, 104
        %v1316 = vpop.permute.xlu0 %1315
        %1317 = vrot.lane.b32.xlu0 %v580, 104
        %v1318 = vpop.permute.xlu0 %1317
        %v1319 = vsel %vm586, %v1316, 0
        %v1321 = vsel %vm586, %v1318, 0
        %1323 = vmatprep.subr.mxu0 0.0
        %1324 = vmatpush1.xpose.msra.mxu0 %v1321
        %1325 = vmatprep.subr.mxu0 0.0
        %1326 = vmatpush1.xpose.msra.mxu0 0.0
        %1327 = vmatprep.subr.mxu0 0.0
        %1328 = vmatpush1.xpose.msra.mxu0 0.0
        %1329 = vmatprep.subr.mxu0 0.0
        %1330 = vmatpush1.xpose.msra.mxu0 0.0
        %1331 = vmatprep.subr.mxu0 0.0
        %1332 = vmatpush1.xpose.msra.mxu0 0.0
        %1333 = vmatprep.subr.mxu0 0.0
        %1334 = vmatpush1.xpose.msra.mxu0 0.0
        %1335 = vmatprep.subr.mxu0 0.0
        %1336 = vmatpush1.xpose.msra.mxu0 0.0
        %1337 = vmatprep.subr.mxu0 0.0
        %1338 = vmatpush1.xpose.msra.mxu0 0.0
        %1339 = vmatprep.subr.mxu0 0.0
        %1340 = vmatpush1.xpose.msra.mxu0 0.0
        %1341 = vmatprep.subr.mxu0 0.0
        %1342 = vmatpush1.xpose.msra.mxu0 0.0
        %1343 = vmatprep.subr.mxu0 0.0
        %1344 = vmatpush1.xpose.msra.mxu0 0.0
        %1345 = vmatprep.subr.mxu0 0.0
        %1346 = vmatpush1.xpose.msra.mxu0 0.0
        %1347 = vmatprep.subr.mxu0 0.0
        %1348 = vmatpush1.xpose.msra.mxu0 0.0
        %1349 = vmatprep.subr.mxu0 0.0
        %1350 = vmatpush1.xpose.msra.mxu0 0.0
        %1351 = vmatprep.subr.mxu0 0.0
        %1352 = vmatpush1.xpose.msra.mxu0 0.0
        %1353 = vmatprep.subr.mxu0 0.0
        %1354 = vmatpush1.xpose.msra.mxu0 0.0
        %1355 = vmatprep.subr.mxu0 0.0
        %1356 = vmatpush1.xpose.msra.mxu0 0.0
        %1357 = vmatprep.subr.mxu0 0.0
        %1358 = vmatpush1.xpose.msra.mxu0 0.0
        %1359 = vmatprep.subr.mxu0 0.0
        %1360 = vmatpush1.xpose.msra.mxu0 0.0
        %1361 = vmatprep.subr.mxu0 0.0
        %1362 = vmatpush1.xpose.msra.mxu0 0.0
        %1363 = vmatprep.subr.mxu0 0.0
        %1364 = vmatpush1.xpose.msra.mxu0 0.0
        %1365 = vmatprep.subr.mxu0 0.0
        %1366 = vmatpush1.xpose.msra.mxu0 0.0
        %1367 = vmatprep.subr.mxu0 0.0
        %1368 = vmatpush1.xpose.msra.mxu0 0.0
        %1369 = vmatprep.subr.mxu0 0.0
        %1370 = vmatpush1.xpose.msra.mxu0 0.0
        %1371 = vmatprep.subr.mxu0 0.0
        %1372 = vmatpush1.xpose.msra.mxu0 0.0
        %1373 = vmatprep.subr.mxu0 0.0
        %1374 = vmatpush1.xpose.msra.mxu0 0.0
        %1375 = vmatprep.subr.mxu0 0.0
        %1376 = vmatpush1.xpose.msra.mxu0 0.0
        %1377 = vmatprep.subr.mxu0 0.0
        %1378 = vmatpush1.xpose.msra.mxu0 0.0
        %1379 = vmatprep.subr.mxu0 0.0
        %1380 = vmatpush1.xpose.msra.mxu0 0.0
        %1381 = vmatprep.subr.mxu0 0.0
        %1382 = vmatpush1.xpose.msra.mxu0 0.0
        %1383 = vmatprep.subr.mxu0 0.0
        %1384 = vmatpush1.xpose.msra.mxu0 0.0
        %1385 = vmatprep.subr.mxu0 0.0
        %1386 = vmatpush1.xpose.msra.mxu0 0.0
        %1387 = vmatprep.mubr.f32.mxu0 0.0
        %1388 = vmatmul.mubr.f32.gmra.mrb[0].mxu0 %v1319
        %v1389 = vpop.f32.mrb[0].mxu0
        %v1390 = vadd.f32 0.0, %v1389
        %v1391 = vpop.f32.mrb[0].mxu0
        %1392 = vdwg.mxu0
        %v1393 = vsel %vm585, %v1390, -1e+30
        %v1394 = vsel %vm586, %v1393, -inf
        %1395 = vmax.xlane.f32.xlu0 %v1394
        %v1396 = vpop.xlane.xlu0 %1395
        %v1397 = vsub.f32 %v1393, %v1396
        %v1398 = vmul.f32 %v1397, 1.442695
        %v1399 = vpow.pop %v1398
        %v1400 = vsel %vm586, %v1399, 0.0
        %1401 = vadd.xlane.f32.xlu0 %v1400
        %v1402 = vpop.xlane.xlu0 %1401
        %1403 = vrot.lane.b32.xlu0 %v572, 104
        %v1404 = vpop.permute.xlu0 %1403
        %v1407 = vsel %vm586, %v1399, 0
        %1409 = vmatprep.subr.mxu0 0.0
        %1410 = vmatpush1.msra.mxu0 %v1404
        %1411 = vmatprep.subr.mxu0 0.0
        %1412 = vmatpush1.msra.mxu0 0.0
        %1413 = vmatprep.subr.mxu0 0.0
        %1414 = vmatpush1.msra.mxu0 0.0
        %1415 = vmatprep.subr.mxu0 0.0
        %1416 = vmatpush1.msra.mxu0 0.0
        %1417 = vmatprep.subr.mxu0 0.0
        %1418 = vmatpush1.msra.mxu0 0.0
        %1419 = vmatprep.subr.mxu0 0.0
        %1420 = vmatpush1.msra.mxu0 0.0
        %1421 = vmatprep.subr.mxu0 0.0
        %1422 = vmatpush1.msra.mxu0 0.0
        %1423 = vmatprep.subr.mxu0 0.0
        %1424 = vmatpush1.msra.mxu0 0.0
        %1425 = vmatprep.subr.mxu0 0.0
        %1426 = vmatpush1.msra.mxu0 0.0
        %1427 = vmatprep.subr.mxu0 0.0
        %1428 = vmatpush1.msra.mxu0 0.0
        %1429 = vmatprep.subr.mxu0 0.0
        %1430 = vmatpush1.msra.mxu0 0.0
        %1431 = vmatprep.subr.mxu0 0.0
        %1432 = vmatpush1.msra.mxu0 0.0
        %1433 = vmatprep.subr.mxu0 0.0
        %1434 = vmatpush1.msra.mxu0 0.0
        %1435 = vmatprep.subr.mxu0 0.0
        %1436 = vmatpush1.msra.mxu0 0.0
        %1437 = vmatprep.subr.mxu0 0.0
        %1438 = vmatpush1.msra.mxu0 0.0
        %1439 = vmatprep.subr.mxu0 0.0
        %1440 = vmatpush1.msra.mxu0 0.0
        %1441 = vmatprep.subr.mxu0 0.0
        %1442 = vmatpush1.msra.mxu0 0.0
        %1443 = vmatprep.subr.mxu0 0.0
        %1444 = vmatpush1.msra.mxu0 0.0
        %1445 = vmatprep.subr.mxu0 0.0
        %1446 = vmatpush1.msra.mxu0 0.0
        %1447 = vmatprep.subr.mxu0 0.0
        %1448 = vmatpush1.msra.mxu0 0.0
        %1449 = vmatprep.subr.mxu0 0.0
        %1450 = vmatpush1.msra.mxu0 0.0
        %1451 = vmatprep.subr.mxu0 0.0
        %1452 = vmatpush1.msra.mxu0 0.0
        %1453 = vmatprep.subr.mxu0 0.0
        %1454 = vmatpush1.msra.mxu0 0.0
        %1455 = vmatprep.subr.mxu0 0.0
        %1456 = vmatpush1.msra.mxu0 0.0
        %1457 = vmatprep.subr.mxu0 0.0
        %1458 = vmatpush1.msra.mxu0 0.0
        %1459 = vmatprep.subr.mxu0 0.0
        %1460 = vmatpush1.msra.mxu0 0.0
        %1461 = vmatprep.subr.mxu0 0.0
        %1462 = vmatpush1.msra.mxu0 0.0
        %1463 = vmatprep.subr.mxu0 0.0
        %1464 = vmatpush1.msra.mxu0 0.0
        %1465 = vmatprep.subr.mxu0 0.0
        %1466 = vmatpush1.msra.mxu0 0.0
        %1467 = vmatprep.subr.mxu0 0.0
        %1468 = vmatpush1.msra.mxu0 0.0
        %1469 = vmatprep.subr.mxu0 0.0
        %1470 = vmatpush1.msra.mxu0 0.0
        %1471 = vmatprep.subr.mxu0 0.0
        %1472 = vmatpush1.msra.mxu0 0.0
        %1473 = vmatprep.mubr.f32.mxu0 0.0
        %1474 = vmatmul.mubr.f32.gmra.mrb[0].mxu0 %v1407
        %v1475 = vpop.f32.mrb[0].mxu0
        %v1476 = vadd.f32 0.0, %v1475
        %v1477 = vpop.f32.mrb[0].mxu0
        %1478 = vdwg.mxu0
        %v1479 = vrcp.pop %v1402
        %v1480 = vmul.f32 %v1402, %v1479
        %v1481 = vsub.f32 2.0, %v1480
        %v1482 = vmul.f32 %v1479, %v1481
        %v1483 = vmul.f32 %v1476, %v1482
        %s1484 = scalar_lea.vmem %s2, 24
        %v1485 = vld [vmem:[%s1484] sm:$0xff]
        %v1487 = vsel %vm586, %v1483, 0
        %1489 = vmatprep.subr.mxu0 0.0
        %1490 = vmatpush1.msra.mxu0 %v1485
        %1491 = vmatprep.subr.mxu0 0.0
        %1492 = vmatpush1.msra.mxu0 0.0
        %1493 = vmatprep.subr.mxu0 0.0
        %1494 = vmatpush1.msra.mxu0 0.0
        %1495 = vmatprep.subr.mxu0 0.0
        %1496 = vmatpush1.msra.mxu0 0.0
        %1497 = vmatprep.subr.mxu0 0.0
        %1498 = vmatpush1.msra.mxu0 0.0
        %1499 = vmatprep.subr.mxu0 0.0
        %1500 = vmatpush1.msra.mxu0 0.0
        %1501 = vmatprep.subr.mxu0 0.0
        %1502 = vmatpush1.msra.mxu0 0.0
        %1503 = vmatprep.subr.mxu0 0.0
        %1504 = vmatpush1.msra.mxu0 0.0
        %1505 = vmatprep.subr.mxu0 0.0
        %1506 = vmatpush1.msra.mxu0 0.0
        %1507 = vmatprep.subr.mxu0 0.0
        %1508 = vmatpush1.msra.mxu0 0.0
        %1509 = vmatprep.subr.mxu0 0.0
        %1510 = vmatpush1.msra.mxu0 0.0
        %1511 = vmatprep.subr.mxu0 0.0
        %1512 = vmatpush1.msra.mxu0 0.0
        %1513 = vmatprep.subr.mxu0 0.0
        %1514 = vmatpush1.msra.mxu0 0.0
        %1515 = vmatprep.subr.mxu0 0.0
        %1516 = vmatpush1.msra.mxu0 0.0
        %1517 = vmatprep.subr.mxu0 0.0
        %1518 = vmatpush1.msra.mxu0 0.0
        %1519 = vmatprep.subr.mxu0 0.0
        %1520 = vmatpush1.msra.mxu0 0.0
        %1521 = vmatprep.subr.mxu0 0.0
        %1522 = vmatpush1.msra.mxu0 0.0
        %1523 = vmatprep.subr.mxu0 0.0
        %1524 = vmatpush1.msra.mxu0 0.0
        %1525 = vmatprep.subr.mxu0 0.0
        %1526 = vmatpush1.msra.mxu0 0.0
        %1527 = vmatprep.subr.mxu0 0.0
        %1528 = vmatpush1.msra.mxu0 0.0
        %1529 = vmatprep.subr.mxu0 0.0
        %1530 = vmatpush1.msra.mxu0 0.0
        %1531 = vmatprep.subr.mxu0 0.0
        %1532 = vmatpush1.msra.mxu0 0.0
        %1533 = vmatprep.subr.mxu0 0.0
        %1534 = vmatpush1.msra.mxu0 0.0
        %1535 = vmatprep.subr.mxu0 0.0
        %1536 = vmatpush1.msra.mxu0 0.0
        %1537 = vmatprep.subr.mxu0 0.0
        %1538 = vmatpush1.msra.mxu0 0.0
        %1539 = vmatprep.subr.mxu0 0.0
        %1540 = vmatpush1.msra.mxu0 0.0
        %1541 = vmatprep.subr.mxu0 0.0
        %1542 = vmatpush1.msra.mxu0 0.0
        %1543 = vmatprep.subr.mxu0 0.0
        %1544 = vmatpush1.msra.mxu0 0.0
        %1545 = vmatprep.subr.mxu0 0.0
        %1546 = vmatpush1.msra.mxu0 0.0
        %1547 = vmatprep.subr.mxu0 0.0
        %1548 = vmatpush1.msra.mxu0 0.0
        %1549 = vmatprep.subr.mxu0 0.0
        %1550 = vmatpush1.msra.mxu0 0.0
        %1551 = vmatprep.subr.mxu0 0.0
        %1552 = vmatpush1.msra.mxu0 0.0
        %1553 = vmatprep.mubr.f32.mxu0 0.0
        %1554 = vmatmul.mubr.f32.gmra.mrb[0].mxu0 %v1487
        %v1555 = vpop.f32.mrb[0].mxu0
        %v1556 = vadd.f32 0.0, %v1555
        %v1557 = vpop.f32.mrb[0].mxu0
        %1558 = vdwg.mxu0
        %v1559 = vadd.f32 %v1314, %v1556
        %1560 = vst.msk [vmem:[%s188] sm:$0xff] %vm201, %v1559
        %s1561 = sand.u32 %s115, 1
        %s1562 = scalar_lea.sflag [#allocation3], %s1561
        %s1563 = sand.u32 %s115, 1
        %s1564 = smul.addr %s1563, 8
        %s1565 = scalar_lea.vmem [#allocation2], %s1564
        // Predicated region
        $region37: #{causal_self_attention.1} parent=35 // pred_check
          %p1566 = pneg %p125
        $region38: #{causal_self_attention.1} parent=35 // pred_check_branch
          %1568 = sbr.rel (%p1566) target = $region40
        $region39: #{causal_self_attention.1} parent=35 // pred_region
          %s1570 = ssub.s32 128, 128
          %1571 = vsyncadd %s1562, %s1570
          %s1572 = smul.addr %s18, 128
          %s1573 = scalar_lea.hbm %s4, %s1572
          %s1575 = sshll.u32 %s1565, 4
          %s1576 = int_to_ptr.vmem [resolvable:$true] %s1575
          %1578 = dma.vmem_to_hbm [thread:$0]  %s1576, 128, %s1573, %s1562
        $region40: #{causal_self_attention.1} parent=35 // pred_fallthru
          _
      $region36: #{causal_self_attention.1} parent=5 // pred_fallthru
        _
      %p1579 = scmp.le.s32.totalorder 2, %s13
      // Predicated region
      $region41: #{causal_self_attention.1} parent=5 // pred_check
        %p1580 = pneg %p1579
      $region42: #{causal_self_attention.1} parent=5 // pred_check_branch
        %1582 = sbr.rel (%p1580) target = $region44
      $region43: #{causal_self_attention.1} parent=5 // pred_region
        %s1583 = ssub.s32 %s13, 2
        // Predicated region
        $region45: #{causal_self_attention.1} parent=43 // pred_check
          %p1584 = pneg %p131
        $region46: #{causal_self_attention.1} parent=43 // pred_check_branch
          %1586 = sbr.rel (%p1584) target = $region48
        $region47: #{causal_self_attention.1} parent=43 // pred_region
          %s1587 = sand.u32 %s116, 1
          %s1588 = scalar_lea.sflag [#allocation3], %s1587
          %s1589 = sand.u32 %s116, 1
          %s1590 = smul.addr %s1589, 8
          %s1591 = scalar_lea.vmem [#allocation2], %s1590
          %1592 = dma.done %s1588, 128
        $region48: #{causal_self_attention.1} parent=43 // pred_fallthru
          _
      $region44: #{causal_self_attention.1} parent=5 // pred_fallthru
        _
    $region6: #{causal_self_attention.1} parent=1 // loop_footer
      %s17 = sadd.s32 1, %s13
    $region7: #{causal_self_attention.1} parent=1 // loop_footer_branch
      %12 = sbr.rel target = $region3
    $region8: #{causal_self_attention.1} parent=1 // loop_exit
      _
    %1593 = vsyncpa [#allocation3], 1
    %s1594 = scalar_lea.sflag [#allocation3], 1
    %1595 = vsyncpa %s1594, 1

</llo_original>
